<compile_context>
chip_gen: v7x
topology: tpu7x:2x2x1
jax: 0.10.0
libtpu: 0.0.40
codegen_flags: <defaults>
</compile_context>

<pallas_src>
import functools

import jax
import jax.numpy as jnp
from jax.experimental import pallas as pl
from jax.experimental.pallas import tpu as pltpu

BN_EPS = 1e-5
LEAKY_SLOPE = 0.2
K = 4          # conv kernel size
S = 2          # conv stride

_VMEM_SPEC = pl.BlockSpec(memory_space=pltpu.MemorySpace.VMEM)


# ----------------------------------------------------------------------------
# Fused Pallas kernel: conv1+BN1+LReLU -> conv2+BN2+LReLU -> conv3 (+bias)
# ----------------------------------------------------------------------------
def _fused_disc_kernel(p1u_ref, w1bd_ref, w1f_ref, psum_ref, gram_ref,
                       g1_ref, be1_ref, w2s_ref, g2_ref, be2_ref,
                       w3_ref, b3_ref, o_ref, *, m1_count, rows_per_img):
    """Whole Discriminator forward on VMEM-resident data.

    p1u_ref : (N*25, 16*kfeat)  block1 patches, block2-offset-major (lane dense)
    w1bd_ref: (16*kfeat, 16*H)  block-diagonal block1 weight (kron(I16, w1))
    w1f_ref : (kfeat, H)        block1 weight, f32, for BN1 statistics
    psum_ref: (1, kfeat)        column sum of ALL N*13*13 block1 patches (f32)
    gram_ref: (kfeat, kfeat)    Gram matrix P^T P of those patches (f32)
    g1/be1  : (1, H)            BN1 gamma / beta
    w2s_ref : (16*H, 2H)        stacked per-offset block2 weights
    g2/be2  : (1, 2H)           BN2 gamma / beta
    w3_ref  : (N*25, 2H)        block3 weights laid out per block2 row
    b3_ref  : (1, 1)            block3 bias
    o_ref   : (1, N)            logits (lane-dense; wrapper reshapes to (N,1))
    """
    f32 = jnp.float32
    hdim = w1f_ref.shape[1]
    n_off = w1bd_ref.shape[1] // hdim        # 16 block2 kernel offsets
    n_img = o_ref.shape[1]
    m2 = p1u_ref.shape[0]                    # N * 25 block2 output positions

    # ---------------- BN1 batch statistics (exact, from patch moments) ------
    # Conv biases of blocks 1/2 are dropped: a per-channel constant is exactly
    # cancelled by the training-mode BN mean subtraction.
    w1f = w1f_ref[...]                                           # f32 (kfeat,H)
    inv_m1 = 1.0 / float(m1_count)
    mu1 = jnp.dot(psum_ref[...], w1f,
                  preferred_element_type=f32) * inv_m1           # (1, H)
    gw = jnp.dot(gram_ref[...], w1f, preferred_element_type=f32) # (kfeat, H)
    ex2 = jnp.sum(gw * w1f, axis=0, keepdims=True) * inv_m1      # (1, H)
    var1 = jnp.maximum(ex2 - mu1 * mu1, 0.0)
    scale1 = g1_ref[...] * jax.lax.rsqrt(var1 + BN_EPS)          # EUP slot
    shift1 = be1_ref[...] - scale1 * mu1
    # Per-column scale/shift for the offset-major (1, 16*H) feature layout.
    scale1_big = jnp.concatenate([scale1] * n_off, axis=1)       # (1, 16H)
    shift1_big = jnp.concatenate([shift1] * n_off, axis=1)

    # ---------------- block1 data path: ONE matmul, K = 16*kfeat ------------
    y1 = jnp.dot(p1u_ref[...], w1bd_ref[...],
                 preferred_element_type=f32)                     # (N*25, 16H)
    z1 = y1 * scale1_big + shift1_big                            # folded BN1
    a1 = jnp.maximum(z1, LEAKY_SLOPE * z1)                       # LeakyReLU
    a1 = a1.astype(w2s_ref.dtype)                                # bf16 for MXU

    # ---------------- block2: ONE matmul (K = 16H) + BN2 + LeakyReLU --------
    y2 = jnp.dot(a1, w2s_ref[...], preferred_element_type=f32)   # (N*25, 2H)
    mu2 = jnp.mean(y2, axis=0, keepdims=True)
    c2 = y2 - mu2
    var2 = jnp.mean(c2 * c2, axis=0, keepdims=True)
    scale2 = g2_ref[...] * jax.lax.rsqrt(var2 + BN_EPS)
    shift2 = be2_ref[...] - scale2 * mu2
    z2 = y2 * scale2 + shift2
    a2 = jnp.maximum(z2, LEAKY_SLOPE * z2)                       # (N*25, 2H)

    # ---------------- block3 (Cout = 1): multiply + segment reduce ----------
    # out[n] = sum_{rows j of image n, channels c} a2[j,c] * w3[j,c] + b3
    prod = a2 * w3_ref[...]
    rowsum = jnp.sum(prod, axis=1, keepdims=True)                # (N*25, 1)
    row_idx = jax.lax.broadcasted_iota(jnp.int32, (m2, n_img), 0)
    img_idx = jax.lax.broadcasted_iota(jnp.int32, (m2, n_img), 1)
    seg = jnp.logical_and(row_idx >= img_idx * rows_per_img,
                          row_idx < (img_idx + 1) * rows_per_img)
    out = jnp.sum(jnp.where(seg, rowsum, 0.0), axis=0, keepdims=True)  # (1, N)
    o_ref[...] = out + b3_ref[...]


# ----------------------------------------------------------------------------
# Host-side glue (tiny tensors only; everything feeds ONE pallas_call)
# ----------------------------------------------------------------------------
def _im2col_nhwc(x_nhwc):
    """4x4 stride-2 valid patches of an NHWC tensor.

    Returns (N, Ho, Wo, K*K*C) with features ordered (ky, kx, c)."""
    n, h, w, c = x_nhwc.shape
    ho = (h - K) // S + 1
    wo = (w - K) // S + 1
    pieces = []
    for ky in range(K):
        for kx in range(K):
            pieces.append(x_nhwc[:, ky:ky + S * ho:S, kx:kx + S * wo:S, :])
    p = jnp.stack(pieces, axis=3)                   # (N, Ho, Wo, K*K, C)
    return p.reshape(n, ho, wo, K * K * c), ho, wo


@functools.partial(jax.jit, static_argnames=("use_bf16",))
def discriminator_forward(image_nchw, params, *, use_bf16=True):
    """image_nchw: (N, im_chan, 28, 28) float32 -> (N, 1)."""
    p1, p2, p3 = params
    n = image_nchw.shape[0]
    hdim = p1["w"].shape[0]
    cin = p1["w"].shape[1]
    hdim2 = p2["w"].shape[0]
    kfeat = K * K * cin

    # Block1 patches (tiny; these slices fuse into a few XLA ops).
    x_nhwc = jnp.transpose(image_nchw, (0, 2, 3, 1))
    patches1, h1, w1o = _im2col_nhwc(x_nhwc)        # (N, 13, 13, 16*Cin)

    # Geometry: the fused kernel assumes the final conv output is 1x1
    # (the 28x28 MNIST use of this module).
    h2 = (h1 - K) // S + 1
    w2o = (w1o - K) // S + 1
    assert (h2 - K) // S + 1 == 1 and (w2o - K) // S + 1 == 1, (
        "fused kernel assumes a 1x1 final conv output (28x28-style input)")
    rows_per_img = h2 * w2o                         # 25
    m2 = n * rows_per_img
    m1_count = n * h1 * w1o                         # N * 169

    # BN1 moments of the conv1 pre-activation, recovered exactly from the full
    # 169-position patch set (no duplicated block-1 matmul inside the kernel).
    p_flat = patches1.reshape(m1_count, kfeat).astype(jnp.float32)
    psum = jnp.sum(p_flat, axis=0, keepdims=True)           # (1, kfeat)
    gram = jnp.dot(p_flat.T, p_flat)                         # (kfeat, kfeat)

    # Implicit block-2 im2col: offset-major, lane-dense (N*25, 16*kfeat).
    groups = []
    for ky in range(K):
        for kx in range(K):
            groups.append(patches1[:, ky:ky + S * h2:S, kx:kx + S * w2o:S, :])
    p1u = jnp.concatenate(groups, axis=-1).reshape(m2, K * K * kfeat)

    # Weights, laid out to match the patch orderings above.
    w1_mat = jnp.transpose(p1["w"], (2, 3, 1, 0)).reshape(kfeat, hdim)   # f32
    w1bd = jnp.kron(jnp.eye(K * K, dtype=jnp.float32), w1_mat)  # (16k, 16H)
    w2s = jnp.transpose(p2["w"], (2, 3, 1, 0)).reshape(K * K * hdim, hdim2)

    mxu_dtype = jnp.bfloat16 if use_bf16 else jnp.float32
    p1u = p1u.astype(mxu_dtype)       # MXU operands only; BN math stays f32
    w1bd = w1bd.astype(mxu_dtype)
    w2s = w2s.astype(mxu_dtype)

    g1 = p1["gamma"].reshape(1, hdim)
    be1 = p1["beta"].reshape(1, hdim)
    g2 = p2["gamma"].reshape(1, hdim2)
    be2 = p2["beta"].reshape(1, hdim2)

    # Block3 weights per block2 row (n, oy2, ox2); the unused 5th row/col of
    # the 5x5 map get zero weight.  (Block1/2 conv biases are dropped: exactly
    # cancelled by BN.  Block3's bias is kept.)
    w3_sp = jnp.transpose(p3["w"][0], (1, 2, 0))                   # (4, 4, 2H)
    w3_sp = jnp.pad(w3_sp, ((0, h2 - K), (0, w2o - K), (0, 0)))    # (5, 5, 2H)
    w3_full = jnp.tile(w3_sp.reshape(rows_per_img, hdim2), (n, 1)) # (N*25, 2H)
    b3 = p3["b"].reshape(1, 1)

    kernel = functools.partial(_fused_disc_kernel,
                               m1_count=m1_count, rows_per_img=rows_per_img)

    out_t = pl.pallas_call(
        kernel,
        out_shape=jax.ShapeDtypeStruct((1, n), jnp.float32),
        in_specs=[_VMEM_SPEC] * 12,
        out_specs=_VMEM_SPEC,
        compiler_params=pltpu.CompilerParams(
            vmem_limit_bytes=32 * 1024 * 1024),     # safe on v7x (64 MiB VMEM)
    )(p1u, w1bd, w1_mat, psum, gram, g1, be1, w2s, g2, be2, w3_full, b3)
    return out_t.reshape(n, 1)


# ----------------------------------------------------------------------------
# Parameter init (deterministic, PyTorch weight layouts)
# ----------------------------------------------------------------------------
def init_params(key, im_chan=1, hidden_dim=64):
    dims = [(im_chan, hidden_dim), (hidden_dim, hidden_dim * 2), (hidden_dim * 2, 1)]
    params = []
    for idx, (cin, cout) in enumerate(dims):
        key, kw, kb = jax.random.split(key, 3)
        w = jax.random.normal(kw, (cout, cin, 4, 4), jnp.float32) * 0.05
        b = jax.random.normal(kb, (cout,), jnp.float32) * 0.05
        if idx < 2:  # blocks with BatchNorm
            key, kg, kbeta = jax.random.split(key, 3)
            gamma = 1.0 + 0.1 * jax.random.normal(kg, (cout,), jnp.float32)
            beta = 0.1 * jax.random.normal(kbeta, (cout,), jnp.float32)
            params.append(dict(w=w, b=b, gamma=gamma, beta=beta))
        else:
            params.append(dict(w=w, b=b))
    return params


# ----------------------------------------------------------------------------
# Pure-JAX reference (correctness check of the Pallas path)
# ----------------------------------------------------------------------------
def _reference_forward(image_nchw, params):
    x = image_nchw
    for idx, p in enumerate(params):
        y = jax.lax.conv_general_dilated(
            x, p["w"], window_strides=(2, 2), padding="VALID",
            dimension_numbers=("NCHW", "OIHW", "NCHW"))
        y = y + p["b"].reshape(1, -1, 1, 1)
        if idx < 2:
            mean = jnp.mean(y, axis=(0, 2, 3), keepdims=True)
            var = jnp.mean((y - mean) ** 2, axis=(0, 2, 3), keepdims=True)
            y = (y - mean) * jax.lax.rsqrt(var + BN_EPS)
            y = p["gamma"].reshape(1, -1, 1, 1) * y + p["beta"].reshape(1, -1, 1, 1)
            y = jnp.where(y >= 0.0, y, LEAKY_SLOPE * y)
        x = y
    return x.reshape(x.shape[0], -1)


if __name__ == "__main__":
    key = jax.random.PRNGKey(0)
    k_img, k_par = jax.random.split(key)

    # Small shapes consistent with the module: MNIST-like 28x28, im_chan=1.
    batch, im_chan, hidden_dim = 2, 1, 32
    image = jax.random.normal(k_img, (batch, im_chan, 28, 28), jnp.float32)
    params = init_params(k_par, im_chan=im_chan, hidden_dim=hidden_dim)

    ref = _reference_forward(image, params)

    # f32 path (bit-exact math up to rounding/reassociation).
    out_f32 = jax.block_until_ready(
        discriminator_forward(image, params, use_bf16=False))
    assert out_f32.shape == (batch, 1), out_f32.shape
    assert jnp.allclose(out_f32, ref, atol=1e-3, rtol=1e-3), (out_f32, ref)

    # bf16-MXU path (ALL matmul operands in bf16, f32 accumulation + BN math);
    # looser tolerance since both conv matmuls now use bf16 inputs.
    out_bf16 = jax.block_until_ready(
        discriminator_forward(image, params, use_bf16=True))
    assert out_bf16.shape == (batch, 1), out_bf16.shape
    assert jnp.allclose(out_bf16, ref, atol=1e-1, rtol=1e-1), (out_bf16, ref)

    print("KERNEL_OK")
</pallas_src>

<mosaic_0001>
module attributes {stable_mosaic.version = 11 : i64} {
  func.func @_fused_disc_kernel(%arg0: memref<50x256xf32, #tpu.memory_space<vmem>>, %arg1: memref<256x512xf32, #tpu.memory_space<vmem>>, %arg2: memref<16x32xf32, #tpu.memory_space<vmem>>, %arg3: memref<1x16xf32, #tpu.memory_space<vmem>>, %arg4: memref<16x16xf32, #tpu.memory_space<vmem>>, %arg5: memref<1x32xf32, #tpu.memory_space<vmem>>, %arg6: memref<1x32xf32, #tpu.memory_space<vmem>>, %arg7: memref<512x64xf32, #tpu.memory_space<vmem>>, %arg8: memref<1x64xf32, #tpu.memory_space<vmem>>, %arg9: memref<1x64xf32, #tpu.memory_space<vmem>>, %arg10: memref<50x64xf32, #tpu.memory_space<vmem>>, %arg11: memref<1x1xf32, #tpu.memory_space<vmem>>, %arg12: memref<1x2xf32, #tpu.memory_space<vmem>>) attributes {dimension_semantics = [], scalar_prefetch = 0 : i64, scratch_operands = 0 : i64, tpu.core_type = #tpu.core_type<tc>} {
    %c0 = arith.constant 0 : index
    %c0_0 = arith.constant 0 : index
    %0 = vector.load %arg2[%c0, %c0_0] : memref<16x32xf32, #tpu.memory_space<vmem>>, vector<16x32xf32>
    %c0_1 = arith.constant 0 : index
    %c0_2 = arith.constant 0 : index
    %1 = vector.load %arg3[%c0_1, %c0_2] : memref<1x16xf32, #tpu.memory_space<vmem>>, vector<1x16xf32>
    %cst = arith.constant dense<0.000000e+00> : vector<1x32xf32>
    %2 = tpu.matmul %1, %0, %cst {dimension_numbers = #tpu.dot_dimension_numbers<[1], [0], [0], [1], [0, 0, 1, 1], [], []>} : vector<1x16xf32>, vector<16x32xf32>, vector<1x32xf32> -> vector<1x32xf32>
    %cst_3 = arith.constant 2.958580e-03 : f32
    %3 = vector.broadcast %cst_3 : f32 to vector<1x32xf32>
    %4 = arith.mulf %2, %3 : vector<1x32xf32>
    %c0_4 = arith.constant 0 : index
    %c0_5 = arith.constant 0 : index
    %5 = vector.load %arg4[%c0_4, %c0_5] : memref<16x16xf32, #tpu.memory_space<vmem>>, vector<16x16xf32>
    %cst_6 = arith.constant dense<0.000000e+00> : vector<16x32xf32>
    %6 = tpu.matmul %5, %0, %cst_6 {dimension_numbers = #tpu.dot_dimension_numbers<[1], [0], [0], [1], [0, 0, 1, 1], [], []>} : vector<16x16xf32>, vector<16x32xf32>, vector<16x32xf32> -> vector<16x32xf32>
    %7 = arith.mulf %6, %0 : vector<16x32xf32>
    %cst_7 = arith.constant dense<0.000000e+00> : vector<32xf32>
    %8 = vector.multi_reduction <add>, %7, %cst_7 [0] : vector<16x32xf32> to vector<32xf32>
    %9 = vector.shape_cast %8 : vector<32xf32> to vector<1x32xf32>
    %cst_8 = arith.constant 2.958580e-03 : f32
    %10 = vector.broadcast %cst_8 : f32 to vector<1x32xf32>
    %11 = arith.mulf %9, %10 : vector<1x32xf32>
    %12 = arith.mulf %4, %4 : vector<1x32xf32>
    %13 = arith.subf %11, %12 : vector<1x32xf32>
    %cst_9 = arith.constant 0.000000e+00 : f32
    %14 = vector.broadcast %cst_9 : f32 to vector<1x32xf32>
    %15 = arith.maximumf %13, %14 : vector<1x32xf32>
    %c0_10 = arith.constant 0 : index
    %c0_11 = arith.constant 0 : index
    %16 = vector.load %arg5[%c0_10, %c0_11] : memref<1x32xf32, #tpu.memory_space<vmem>>, vector<1x32xf32>
    %cst_12 = arith.constant 9.99999974E-6 : f32
    %17 = vector.broadcast %cst_12 : f32 to vector<1x32xf32>
    %18 = arith.addf %15, %17 : vector<1x32xf32>
    %19 = math.rsqrt %18 : vector<1x32xf32>
    %20 = arith.mulf %16, %19 : vector<1x32xf32>
    %c0_13 = arith.constant 0 : index
    %c0_14 = arith.constant 0 : index
    %21 = vector.load %arg6[%c0_13, %c0_14] : memref<1x32xf32, #tpu.memory_space<vmem>>, vector<1x32xf32>
    %22 = arith.mulf %20, %4 : vector<1x32xf32>
    %23 = arith.subf %21, %22 : vector<1x32xf32>
    %24 = tpu.concatenate %20, %20, %20, %20, %20, %20, %20, %20, %20, %20, %20, %20, %20, %20, %20, %20 in 1 : vector<1x32xf32>, vector<1x32xf32>, vector<1x32xf32>, vector<1x32xf32>, vector<1x32xf32>, vector<1x32xf32>, vector<1x32xf32>, vector<1x32xf32>, vector<1x32xf32>, vector<1x32xf32>, vector<1x32xf32>, vector<1x32xf32>, vector<1x32xf32>, vector<1x32xf32>, vector<1x32xf32>, vector<1x32xf32> -> vector<1x512xf32>
    %25 = tpu.concatenate %23, %23, %23, %23, %23, %23, %23, %23, %23, %23, %23, %23, %23, %23, %23, %23 in 1 : vector<1x32xf32>, vector<1x32xf32>, vector<1x32xf32>, vector<1x32xf32>, vector<1x32xf32>, vector<1x32xf32>, vector<1x32xf32>, vector<1x32xf32>, vector<1x32xf32>, vector<1x32xf32>, vector<1x32xf32>, vector<1x32xf32>, vector<1x32xf32>, vector<1x32xf32>, vector<1x32xf32>, vector<1x32xf32> -> vector<1x512xf32>
    %c0_15 = arith.constant 0 : index
    %c0_16 = arith.constant 0 : index
    %26 = vector.load %arg0[%c0_15, %c0_16] : memref<50x256xf32, #tpu.memory_space<vmem>>, vector<50x256xf32>
    %c0_17 = arith.constant 0 : index
    %c0_18 = arith.constant 0 : index
    %27 = vector.load %arg1[%c0_17, %c0_18] : memref<256x512xf32, #tpu.memory_space<vmem>>, vector<256x512xf32>
    %cst_19 = arith.constant dense<0.000000e+00> : vector<50x512xf32>
    %28 = tpu.matmul %26, %27, %cst_19 {dimension_numbers = #tpu.dot_dimension_numbers<[1], [0], [0], [1], [0, 0, 1, 1], [], []>} : vector<50x256xf32>, vector<256x512xf32>, vector<50x512xf32> -> vector<50x512xf32>
    %29 = vector.broadcast %24 : vector<1x512xf32> to vector<50x512xf32>
    %30 = arith.mulf %28, %29 : vector<50x512xf32>
    %31 = vector.broadcast %25 : vector<1x512xf32> to vector<50x512xf32>
    %32 = arith.addf %30, %31 : vector<50x512xf32>
    %cst_20 = arith.constant 2.000000e-01 : f32
    %33 = vector.broadcast %cst_20 : f32 to vector<50x512xf32>
    %34 = arith.mulf %33, %32 : vector<50x512xf32>
    %35 = arith.maximumf %32, %34 : vector<50x512xf32>
    %c0_21 = arith.constant 0 : index
    %c0_22 = arith.constant 0 : index
    %36 = vector.load %arg7[%c0_21, %c0_22] : memref<512x64xf32, #tpu.memory_space<vmem>>, vector<512x64xf32>
    %cst_23 = arith.constant dense<0.000000e+00> : vector<50x64xf32>
    %37 = tpu.matmul %35, %36, %cst_23 {dimension_numbers = #tpu.dot_dimension_numbers<[1], [0], [0], [1], [0, 0, 1, 1], [], []>} : vector<50x512xf32>, vector<512x64xf32>, vector<50x64xf32> -> vector<50x64xf32>
    %cst_24 = arith.constant dense<0.000000e+00> : vector<64xf32>
    %38 = vector.multi_reduction <add>, %37, %cst_24 [0] : vector<50x64xf32> to vector<64xf32>
    %39 = vector.shape_cast %38 : vector<64xf32> to vector<1x64xf32>
    %cst_25 = arith.constant 5.000000e+01 : f32
    %40 = vector.broadcast %cst_25 : f32 to vector<1x64xf32>
    %41 = arith.divf %39, %40 : vector<1x64xf32>
    %42 = vector.broadcast %41 : vector<1x64xf32> to vector<50x64xf32>
    %43 = arith.subf %37, %42 : vector<50x64xf32>
    %44 = arith.mulf %43, %43 : vector<50x64xf32>
    %cst_26 = arith.constant dense<0.000000e+00> : vector<64xf32>
    %45 = vector.multi_reduction <add>, %44, %cst_26 [0] : vector<50x64xf32> to vector<64xf32>
    %46 = vector.shape_cast %45 : vector<64xf32> to vector<1x64xf32>
    %cst_27 = arith.constant 5.000000e+01 : f32
    %47 = vector.broadcast %cst_27 : f32 to vector<1x64xf32>
    %48 = arith.divf %46, %47 : vector<1x64xf32>
    %c0_28 = arith.constant 0 : index
    %c0_29 = arith.constant 0 : index
    %49 = vector.load %arg8[%c0_28, %c0_29] : memref<1x64xf32, #tpu.memory_space<vmem>>, vector<1x64xf32>
    %cst_30 = arith.constant 9.99999974E-6 : f32
    %50 = vector.broadcast %cst_30 : f32 to vector<1x64xf32>
    %51 = arith.addf %48, %50 : vector<1x64xf32>
    %52 = math.rsqrt %51 : vector<1x64xf32>
    %53 = arith.mulf %49, %52 : vector<1x64xf32>
    %c0_31 = arith.constant 0 : index
    %c0_32 = arith.constant 0 : index
    %54 = vector.load %arg9[%c0_31, %c0_32] : memref<1x64xf32, #tpu.memory_space<vmem>>, vector<1x64xf32>
    %55 = arith.mulf %53, %41 : vector<1x64xf32>
    %56 = arith.subf %54, %55 : vector<1x64xf32>
    %57 = vector.broadcast %53 : vector<1x64xf32> to vector<50x64xf32>
    %58 = arith.mulf %37, %57 : vector<50x64xf32>
    %59 = vector.broadcast %56 : vector<1x64xf32> to vector<50x64xf32>
    %60 = arith.addf %58, %59 : vector<50x64xf32>
    %cst_33 = arith.constant 2.000000e-01 : f32
    %61 = vector.broadcast %cst_33 : f32 to vector<50x64xf32>
    %62 = arith.mulf %61, %60 : vector<50x64xf32>
    %63 = arith.maximumf %60, %62 : vector<50x64xf32>
    %c0_34 = arith.constant 0 : index
    %c0_35 = arith.constant 0 : index
    %64 = vector.load %arg10[%c0_34, %c0_35] : memref<50x64xf32, #tpu.memory_space<vmem>>, vector<50x64xf32>
    %65 = arith.mulf %63, %64 : vector<50x64xf32>
    %cst_36 = arith.constant dense<0.000000e+00> : vector<50xf32>
    %66 = vector.multi_reduction <add>, %65, %cst_36 [1] : vector<50x64xf32> to vector<50xf32>
    %67 = vector.shape_cast %66 : vector<50xf32> to vector<50x1xf32>
    %68 = tpu.iota {dimensions = array<i32: 0>} : vector<50x2xi32>
    %69 = tpu.iota {dimensions = array<i32: 1>} : vector<50x2xi32>
    %c25_i32 = arith.constant 25 : i32
    %70 = vector.broadcast %c25_i32 : i32 to vector<50x2xi32>
    %71 = arith.muli %69, %70 : vector<50x2xi32>
    %72 = arith.cmpi sge, %68, %71 : vector<50x2xi32>
    %c1_i32 = arith.constant 1 : i32
    %73 = vector.broadcast %c1_i32 : i32 to vector<50x2xi32>
    %74 = arith.addi %69, %73 : vector<50x2xi32>
    %c25_i32_37 = arith.constant 25 : i32
    %75 = vector.broadcast %c25_i32_37 : i32 to vector<50x2xi32>
    %76 = arith.muli %74, %75 : vector<50x2xi32>
    %77 = arith.cmpi slt, %68, %76 : vector<50x2xi32>
    %78 = arith.andi %72, %77 : vector<50x2xi1>
    %cst_38 = arith.constant 0.000000e+00 : f32
    %79 = vector.shape_cast %67 : vector<50x1xf32> to vector<50x1xf32>
    %80 = vector.broadcast %79 : vector<50x1xf32> to vector<50x2xf32>
    %81 = vector.broadcast %cst_38 : f32 to vector<50x2xf32>
    %82 = arith.select %78, %80, %81 : vector<50x2xi1>, vector<50x2xf32>
    %cst_39 = arith.constant dense<0.000000e+00> : vector<2xf32>
    %83 = vector.multi_reduction <add>, %82, %cst_39 [0] : vector<50x2xf32> to vector<2xf32>
    %84 = vector.shape_cast %83 : vector<2xf32> to vector<1x2xf32>
    %c0_40 = arith.constant 0 : index
    %c0_41 = arith.constant 0 : index
    %85 = vector.load %arg11[%c0_40, %c0_41] : memref<1x1xf32, #tpu.memory_space<vmem>>, vector<1x1xf32>
    %86 = vector.broadcast %85 : vector<1x1xf32> to vector<1x2xf32>
    %87 = arith.addf %84, %86 : vector<1x2xf32>
    %c0_42 = arith.constant 0 : index
    %c0_43 = arith.constant 0 : index
    %88 = vector.load %arg12[%c0_42, %c0_43] : memref<1x2xf32, #tpu.memory_space<vmem>>, vector<1x2xf32>
    tpu.vector_store %arg12[%c0_42, %c0_43], %87 {strides = array<i32>} : memref<1x2xf32, #tpu.memory_space<vmem>>, vector<1x2xf32>,
    return
  }
}

</mosaic_0001>

<llo_original>
// kernel: tile.7
$region0: #{tile.7}
  %s0 = inlined_call_operand.vmem [shape: f32[2,25,64], index: 0, kind: input, shape index: {}]
  %s1 = inlined_call_operand.vmem [shape: f32[50,64], index: 1, kind: output, shape index: {}]
  %v2 = vld [vmem:[%s0] sm:$0xff]
  %vm3 = vcmask 523264
  %4 = vst.msk [vmem:[%s1] sm:$0xff] %vm3, %v2
  %s5 = scalar_lea.vmem %s0, 8
  %v6 = vld [vmem:[%s5] sm:$0xff]
  %vm7 = vcmask 523264
  %s8 = scalar_lea.vmem %s1, 8
  %9 = vst.msk [vmem:[%s8] sm:$0xff] %vm7, %v6
  %s10 = scalar_lea.vmem %s0, 16
  %v11 = vld [vmem:[%s10] sm:$0xff]
  %vm12 = vcmask 523264
  %s13 = scalar_lea.vmem %s1, 16
  %14 = vst.msk [vmem:[%s13] sm:$0xff] %vm12, %v11
  %s15 = scalar_lea.vmem %s0, 24
  %s16 = smov 3
  %v17 = vld [vmem:[%s15] ss:$8 sm:%s16]
  %vm18 = vcmask 523264
  %s19 = scalar_lea.vmem %s1, 24
  %20 = vst.msk [vmem:[%s19] sm:$0x3] %vm18, %v17
  %s21 = scalar_lea.vmem %s0, 33
  %v22 = vld [vmem:[%s21] sm:$0xff]
  %vm23 = vcmask 523264
  %s24 = scalar_lea.vmem %s1, 26
  %25 = vst.msk [vmem:[%s24] sm:$0xff] %vm23, %v22
  %s26 = scalar_lea.vmem %s0, 41
  %v27 = vld [vmem:[%s26] sm:$0xff]
  %vm28 = vcmask 523264
  %s29 = scalar_lea.vmem %s1, 34
  %30 = vst.msk [vmem:[%s29] sm:$0xff] %vm28, %v27
  %s31 = scalar_lea.vmem %s0, 49
  %v32 = vld [vmem:[%s31] sm:$0xff]
  %vm33 = vcmask 523264
  %s34 = scalar_lea.vmem %s1, 42
  %35 = vst.msk [vmem:[%s34] sm:$0xff] %vm33, %v32

// kernel: discriminator_forward.1
$region0: #{discriminator_forward.1}
  #allocation0 [shape = 'u32[]', space=smem, size = 0x4, offset = 0x4, fixed_abs, tag = 'smem constant byte address 0x4 - core index']
  #allocation1 [shape = 'u32[144,128]{1,0:T(1,128)}', space=vmem, size = 0x12000, scoped, tag = 'internal scratch']
  #allocation2 [shape = 'f32[1,1]{1,0:T(1,128)S(1)}', space=vmem, size = 0x200, scoped, tag = 'scoped memory for discriminator_forward.1']
  %s0 = inlined_call_operand.vmem [shape: f32[50,256], index: 0, kind: input, shape index: {}]
  %s1 = inlined_call_operand.vmem [shape: f32[256,512], index: 1, kind: input, shape index: {}]
  %s2 = inlined_call_operand.vmem [shape: f32[16,32], index: 2, kind: input, shape index: {}]
  %s3 = inlined_call_operand.vmem [shape: f32[1,16], index: 3, kind: input, shape index: {}]
  %s4 = inlined_call_operand.vmem [shape: f32[16,16], index: 4, kind: input, shape index: {}]
  %s5 = inlined_call_operand.vmem [shape: f32[1,32], index: 5, kind: input, shape index: {}]
  %s6 = inlined_call_operand.vmem [shape: f32[1,32], index: 6, kind: input, shape index: {}]
  %s7 = inlined_call_operand.vmem [shape: f32[512,64], index: 7, kind: input, shape index: {}]
  %s8 = inlined_call_operand.vmem [shape: f32[1,64], index: 8, kind: input, shape index: {}]
  %s9 = inlined_call_operand.vmem [shape: f32[1,64], index: 9, kind: input, shape index: {}]
  %s10 = inlined_call_operand.vmem [shape: f32[50,64], index: 10, kind: input, shape index: {}]
  %s11 = inlined_call_operand.<no memory space> [shape: f32[1,1], index: 11, kind: input, shape index: {}]
  %s12 = inlined_call_operand.hbm [shape: f32[1,2], index: 12, kind: output, shape index: {}]
  %s13 = sld [smem:[#allocation0]]
  $region58: #{discriminator_forward.1} parent=0
    _
  %s15 = ssub.s32 1, %s13
  %s16 = scalar_select 0, %s15, %s13
  %v17 = vstv %s11
  %18 = vst [vmem:[#allocation2] sm:$0x1] %v17
  $region1: #{discriminator_forward.1} parent=0
    #allocation3 [shape = 'u8[512]{0}', space=vmem, size = 0x400, scoped, tag = 'output window, operand 0, single buffered']
    #allocation4 [shape = 's32[1]{0}', space=sflag, size = 0x4, scoped, tag = 'scoped memory for discriminator_forward.1']
    %19 = vsyncpa [#allocation4], 0
    // Predicated region
    $region2: #{discriminator_forward.1} parent=1 // pred_check
      _
    $region3: #{discriminator_forward.1} parent=1 // pred_check_branch
      %21 = sbr.rel (0) target = $region5
    $region4: #{discriminator_forward.1} parent=1 // pred_region
      _
    $region5: #{discriminator_forward.1} parent=1 // pred_fallthru
      _
    // Predicated region
    $region6: #{discriminator_forward.1} parent=1 // pred_check
      _
    $region7: #{discriminator_forward.1} parent=1 // pred_check_branch
      %23 = sbr.rel (0) target = $region9
    $region8: #{discriminator_forward.1} parent=1 // pred_region
      _
    $region9: #{discriminator_forward.1} parent=1 // pred_fallthru
      _
    // Predicated region
    $region10: #{discriminator_forward.1} parent=1 // pred_check
      _
    $region11: #{discriminator_forward.1} parent=1 // pred_check_branch
      %25 = sbr.rel (0) target = $region13
    $region12: #{discriminator_forward.1} parent=1 // pred_region
      _
    $region13: #{discriminator_forward.1} parent=1 // pred_fallthru
      _
    // Predicated region
    $region14: #{discriminator_forward.1} parent=1 // pred_check
      _
    $region15: #{discriminator_forward.1} parent=1 // pred_check_branch
      %27 = sbr.rel (0) target = $region17
    $region16: #{discriminator_forward.1} parent=1 // pred_region
      _
    $region17: #{discriminator_forward.1} parent=1 // pred_fallthru
      _
    // Predicated region
    $region18: #{discriminator_forward.1} parent=1 // pred_check
      _
    $region19: #{discriminator_forward.1} parent=1 // pred_check_branch
      %29 = sbr.rel (0) target = $region21
    $region20: #{discriminator_forward.1} parent=1 // pred_region
      _
    $region21: #{discriminator_forward.1} parent=1 // pred_fallthru
      _
    // Predicated region
    $region22: #{discriminator_forward.1} parent=1 // pred_check
      _
    $region23: #{discriminator_forward.1} parent=1 // pred_check_branch
      %31 = sbr.rel (0) target = $region25
    $region24: #{discriminator_forward.1} parent=1 // pred_region
      _
    $region25: #{discriminator_forward.1} parent=1 // pred_fallthru
      _
    // Predicated region
    $region26: #{discriminator_forward.1} parent=1 // pred_check
      _
    $region27: #{discriminator_forward.1} parent=1 // pred_check_branch
      %33 = sbr.rel (0) target = $region29
    $region28: #{discriminator_forward.1} parent=1 // pred_region
      _
    $region29: #{discriminator_forward.1} parent=1 // pred_fallthru
      _
    // Predicated region
    $region30: #{discriminator_forward.1} parent=1 // pred_check
      _
    $region31: #{discriminator_forward.1} parent=1 // pred_check_branch
      %35 = sbr.rel (0) target = $region33
    $region32: #{discriminator_forward.1} parent=1 // pred_region
      _
    $region33: #{discriminator_forward.1} parent=1 // pred_fallthru
      _
    // Predicated region
    $region34: #{discriminator_forward.1} parent=1 // pred_check
      _
    $region35: #{discriminator_forward.1} parent=1 // pred_check_branch
      %37 = sbr.rel (0) target = $region37
    $region36: #{discriminator_forward.1} parent=1 // pred_region
      _
    $region37: #{discriminator_forward.1} parent=1 // pred_fallthru
      _
    // Predicated region
    $region38: #{discriminator_forward.1} parent=1 // pred_check
      _
    $region39: #{discriminator_forward.1} parent=1 // pred_check_branch
      %39 = sbr.rel (0) target = $region41
    $region40: #{discriminator_forward.1} parent=1 // pred_region
      _
    $region41: #{discriminator_forward.1} parent=1 // pred_fallthru
      _
    // Predicated region
    $region42: #{discriminator_forward.1} parent=1 // pred_check
      _
    $region43: #{discriminator_forward.1} parent=1 // pred_check_branch
      %41 = sbr.rel (0) target = $region45
    $region44: #{discriminator_forward.1} parent=1 // pred_region
      _
    $region45: #{discriminator_forward.1} parent=1 // pred_fallthru
      _
    // Predicated region
    $region46: #{discriminator_forward.1} parent=1 // pred_check
      _
    $region47: #{discriminator_forward.1} parent=1 // pred_check_branch
      %43 = sbr.rel (0) target = $region49
    $region48: #{discriminator_forward.1} parent=1 // pred_region
      _
    $region49: #{discriminator_forward.1} parent=1 // pred_fallthru
      _
    %v44 = vld [vmem:[%s2] sm:$0xff]
    %v45 = vld [vmem:[%s2 + $0x8] sm:$0xff]
    %v46 = vld [vmem:[%s3] sm:$0x1]
    %vm47 = vcmask 130048
    %v49 = vsel %vm47, %v46, 0
    %51 = vmatprep.subr.mxu0 0.0
    %52 = vmatpush1.msra.mxu0 %v44
    %53 = vmatprep.subr.mxu0 0.0
    %54 = vmatpush1.msra.mxu0 %v45
    %55 = vmatprep.subr.mxu0 0.0
    %56 = vmatpush1.msra.mxu0 0.0
    %57 = vmatprep.subr.mxu0 0.0
    %58 = vmatpush1.msra.mxu0 0.0
    %59 = vmatprep.subr.mxu0 0.0
    %60 = vmatpush1.msra.mxu0 0.0
    %61 = vmatprep.subr.mxu0 0.0
    %62 = vmatpush1.msra.mxu0 0.0
    %63 = vmatprep.subr.mxu0 0.0
    %64 = vmatpush1.msra.mxu0 0.0
    %65 = vmatprep.subr.mxu0 0.0
    %66 = vmatpush1.msra.mxu0 0.0
    %67 = vmatprep.subr.mxu0 0.0
    %68 = vmatpush1.msra.mxu0 0.0
    %69 = vmatprep.subr.mxu0 0.0
    %70 = vmatpush1.msra.mxu0 0.0
    %71 = vmatprep.subr.mxu0 0.0
    %72 = vmatpush1.msra.mxu0 0.0
    %73 = vmatprep.subr.mxu0 0.0
    %74 = vmatpush1.msra.mxu0 0.0
    %75 = vmatprep.subr.mxu0 0.0
    %76 = vmatpush1.msra.mxu0 0.0
    %77 = vmatprep.subr.mxu0 0.0
    %78 = vmatpush1.msra.mxu0 0.0
    %79 = vmatprep.subr.mxu0 0.0
    %80 = vmatpush1.msra.mxu0 0.0
    %81 = vmatprep.subr.mxu0 0.0
    %82 = vmatpush1.msra.mxu0 0.0
    %83 = vmatprep.subr.mxu0 0.0
    %84 = vmatpush1.msra.mxu0 0.0
    %85 = vmatprep.subr.mxu0 0.0
    %86 = vmatpush1.msra.mxu0 0.0
    %87 = vmatprep.subr.mxu0 0.0
    %88 = vmatpush1.msra.mxu0 0.0
    %89 = vmatprep.subr.mxu0 0.0
    %90 = vmatpush1.msra.mxu0 0.0
    %91 = vmatprep.subr.mxu0 0.0
    %92 = vmatpush1.msra.mxu0 0.0
    %93 = vmatprep.subr.mxu0 0.0
    %94 = vmatpush1.msra.mxu0 0.0
    %95 = vmatprep.subr.mxu0 0.0
    %96 = vmatpush1.msra.mxu0 0.0
    %97 = vmatprep.subr.mxu0 0.0
    %98 = vmatpush1.msra.mxu0 0.0
    %99 = vmatprep.subr.mxu0 0.0
    %100 = vmatpush1.msra.mxu0 0.0
    %101 = vmatprep.subr.mxu0 0.0
    %102 = vmatpush1.msra.mxu0 0.0
    %103 = vmatprep.subr.mxu0 0.0
    %104 = vmatpush1.msra.mxu0 0.0
    %105 = vmatprep.subr.mxu0 0.0
    %106 = vmatpush1.msra.mxu0 0.0
    %107 = vmatprep.subr.mxu0 0.0
    %108 = vmatpush1.msra.mxu0 0.0
    %109 = vmatprep.subr.mxu0 0.0
    %110 = vmatpush1.msra.mxu0 0.0
    %111 = vmatprep.subr.mxu0 0.0
    %112 = vmatpush1.msra.mxu0 0.0
    %113 = vmatprep.subr.mxu0 0.0
    %114 = vmatpush1.msra.mxu0 0.0
    %115 = vmatprep.mubr.f32.mxu0 0.0
    %116 = vmatmul.mubr.f32.gmra.mrb[0].mxu0 %v49
    %v117 = vpop.f32.mrb[0].mxu0
    %v118 = vadd.f32 0.0, %v117
    %v119 = vpop.f32.mrb[0].mxu0
    %120 = vdwg.mxu0
    %v121 = vmul.f32 %v118, 0.00295858
    %v122 = vld [vmem:[%s4] sm:$0xff]
    %v123 = vld [vmem:[%s4 + $0x8] sm:$0xff]
    %v125 = vsel %vm47, %v122, 0
    %v128 = vsel %vm47, %v123, 0
    %130 = vmatprep.subr.mxu0 0.0
    %131 = vmatpush1.msra.mxu0 %v44
    %132 = vmatprep.subr.mxu0 0.0
    %133 = vmatpush1.msra.mxu0 %v45
    %134 = vmatprep.subr.mxu0 0.0
    %135 = vmatpush1.msra.mxu0 0.0
    %136 = vmatprep.subr.mxu0 0.0
    %137 = vmatpush1.msra.mxu0 0.0
    %138 = vmatprep.subr.mxu0 0.0
    %139 = vmatpush1.msra.mxu0 0.0
    %140 = vmatprep.subr.mxu0 0.0
    %141 = vmatpush1.msra.mxu0 0.0
    %142 = vmatprep.subr.mxu0 0.0
    %143 = vmatpush1.msra.mxu0 0.0
    %144 = vmatprep.subr.mxu0 0.0
    %145 = vmatpush1.msra.mxu0 0.0
    %146 = vmatprep.subr.mxu0 0.0
    %147 = vmatpush1.msra.mxu0 0.0
    %148 = vmatprep.subr.mxu0 0.0
    %149 = vmatpush1.msra.mxu0 0.0
    %150 = vmatprep.subr.mxu0 0.0
    %151 = vmatpush1.msra.mxu0 0.0
    %152 = vmatprep.subr.mxu0 0.0
    %153 = vmatpush1.msra.mxu0 0.0
    %154 = vmatprep.subr.mxu0 0.0
    %155 = vmatpush1.msra.mxu0 0.0
    %156 = vmatprep.subr.mxu0 0.0
    %157 = vmatpush1.msra.mxu0 0.0
    %158 = vmatprep.subr.mxu0 0.0
    %159 = vmatpush1.msra.mxu0 0.0
    %160 = vmatprep.subr.mxu0 0.0
    %161 = vmatpush1.msra.mxu0 0.0
    %162 = vmatprep.subr.mxu0 0.0
    %163 = vmatpush1.msra.mxu0 0.0
    %164 = vmatprep.subr.mxu0 0.0
    %165 = vmatpush1.msra.mxu0 0.0
    %166 = vmatprep.subr.mxu0 0.0
    %167 = vmatpush1.msra.mxu0 0.0
    %168 = vmatprep.subr.mxu0 0.0
    %169 = vmatpush1.msra.mxu0 0.0
    %170 = vmatprep.subr.mxu0 0.0
    %171 = vmatpush1.msra.mxu0 0.0
    %172 = vmatprep.subr.mxu0 0.0
    %173 = vmatpush1.msra.mxu0 0.0
    %174 = vmatprep.subr.mxu0 0.0
    %175 = vmatpush1.msra.mxu0 0.0
    %176 = vmatprep.subr.mxu0 0.0
    %177 = vmatpush1.msra.mxu0 0.0
    %178 = vmatprep.subr.mxu0 0.0
    %179 = vmatpush1.msra.mxu0 0.0
    %180 = vmatprep.subr.mxu0 0.0
    %181 = vmatpush1.msra.mxu0 0.0
    %182 = vmatprep.subr.mxu0 0.0
    %183 = vmatpush1.msra.mxu0 0.0
    %184 = vmatprep.subr.mxu0 0.0
    %185 = vmatpush1.msra.mxu0 0.0
    %186 = vmatprep.subr.mxu0 0.0
    %187 = vmatpush1.msra.mxu0 0.0
    %188 = vmatprep.subr.mxu0 0.0
    %189 = vmatpush1.msra.mxu0 0.0
    %190 = vmatprep.subr.mxu0 0.0
    %191 = vmatpush1.msra.mxu0 0.0
    %192 = vmatprep.subr.mxu0 0.0
    %193 = vmatpush1.msra.mxu0 0.0
    %194 = vmatprep.mubr.f32.mxu0 0.0
    %195 = vmatmul.mubr.f32.gmra.mrb[0].mxu0 %v125
    %v196 = vpop.f32.mrb[0].mxu0
    %v197 = vadd.f32 0.0, %v196
    %v198 = vpop.f32.mrb[0].mxu0
    %199 = vmatprep.mubr.f32.mxu0 0.0
    %200 = vmatmul.mubr.f32.gmra.mrb[0].mxu0 %v128
    %v201 = vpop.f32.mrb[0].mxu0
    %v202 = vadd.f32 0.0, %v201
    %v203 = vpop.f32.mrb[0].mxu0
    %204 = vdwg.mxu0
    %v205 = vmul.f32 %v197, %v44
    %v206 = vmul.f32 %v202, %v45
    %vm207 = vcmask 261120
    %v208 = vsel %vm207, %v205, 0.0
    %v209 = vsel %vm207, %v206, 0.0
    %v210 = vadd.f32 %v208, %v209
    %v211 = vrot.slane %v210, 4
    %v212 = vadd.f32 %v210, %v211
    %v213 = vrot.slane %v212, 2
    %v214 = vadd.f32 %v212, %v213
    %v215 = vrot.slane %v214, 1
    %v216 = vadd.f32 %v214, %v215
    %v217 = vmul.f32 %v216, 0.00295858
    %v218 = vmul.f32 %v121, %v121
    %v219 = vsub.f32 %v217, %v218
    %v220 = vmax.f32 %v219, 0.0
    %v221 = vld [vmem:[%s5] sm:$0x1]
    %v222 = vadd.f32 %v220, 1e-05
    %v223 = vrsqrt.pop %v222
    %v224 = vmul.f32 %v221, %v223
    %v225 = vld [vmem:[%s6] sm:$0x1]
    %v226 = vmul.f32 %v224, %v121
    %v227 = vsub.f32 %v225, %v226
    %v229 = vlaneseq
    %v230 = vshrl.u32 %v229, 7
    %v231 = vsub.s32 0, %v230
    %v232 = vrot.slane %v224, %v231
    %233 = vrot.lane.b32.xlu0 %v232, 32
    %v234 = vpop.permute.xlu0 %233
    %236 = vrot.lane.b32.xlu0 %v232, 64
    %v237 = vpop.permute.xlu0 %236
    %239 = vrot.lane.b32.xlu0 %v232, 96
    %v240 = vpop.permute.xlu0 %239
    %v242 = vsel %vm207, %v224, %v234
    %vm243 = vcmask 523264
    %v244 = vsel %vm243, %v242, %v237
    %vm245 = vcmask 785408
    %v246 = vsel %vm245, %v244, %v240
    %v248 = vlaneseq
    %v249 = vshrl.u32 %v248, 7
    %v250 = vsub.s32 0, %v249
    %v251 = vrot.slane %v227, %v250
    %252 = vrot.lane.b32.xlu0 %v251, 32
    %v253 = vpop.permute.xlu0 %252
    %255 = vrot.lane.b32.xlu0 %v251, 64
    %v256 = vpop.permute.xlu0 %255
    %258 = vrot.lane.b32.xlu0 %v251, 96
    %v259 = vpop.permute.xlu0 %258
    %v261 = vsel %vm207, %v227, %v253
    %v262 = vsel %vm243, %v261, %v256
    %v263 = vsel %vm245, %v262, %v259
    %v264 = vld [vmem:[%s0] sm:$0xff]
    %v265 = vld [vmem:[%s0 + $0x8] sm:$0xff]
    %v266 = vld [vmem:[%s0 + $0x10] sm:$0xff]
    %v267 = vld [vmem:[%s0 + $0x18] sm:$0xff]
    %v268 = vld [vmem:[%s0 + $0x20] sm:$0xff]
    %v269 = vld [vmem:[%s0 + $0x28] sm:$0xff]
    %v270 = vld [vmem:[%s0 + $0x30] sm:$0xff]
    %v271 = vld [vmem:[%s0 + $0x38] sm:$0xff]
    %v272 = vld [vmem:[%s0 + $0x40] sm:$0xff]
    %v273 = vld [vmem:[%s0 + $0x48] sm:$0xff]
    %v274 = vld [vmem:[%s0 + $0x50] sm:$0xff]
    %v275 = vld [vmem:[%s0 + $0x58] sm:$0xff]
    %v276 = vld [vmem:[%s0 + $0x60] sm:$0x3]
    %v277 = vld [vmem:[%s0 + $0x68] sm:$0x3]
    %v278 = vld [vmem:[%s1] sm:$0xff]
    %v279 = vld [vmem:[%s1 + $0x8] sm:$0xff]
    %v280 = vld [vmem:[%s1 + $0x10] sm:$0xff]
    %v281 = vld [vmem:[%s1 + $0x18] sm:$0xff]
    %v282 = vld [vmem:[%s1 + $0x20] sm:$0xff]
    %v283 = vld [vmem:[%s1 + $0x28] sm:$0xff]
    %v284 = vld [vmem:[%s1 + $0x30] sm:$0xff]
    %v285 = vld [vmem:[%s1 + $0x38] sm:$0xff]
    %v286 = vld [vmem:[%s1 + $0x40] sm:$0xff]
    %v287 = vld [vmem:[%s1 + $0x48] sm:$0xff]
    %v288 = vld [vmem:[%s1 + $0x50] sm:$0xff]
    %v289 = vld [vmem:[%s1 + $0x58] sm:$0xff]
    %v290 = vld [vmem:[%s1 + $0x60] sm:$0xff]
    %v291 = vld [vmem:[%s1 + $0x68] sm:$0xff]
    %v292 = vld [vmem:[%s1 + $0x70] sm:$0xff]
    %v293 = vld [vmem:[%s1 + $0x78] sm:$0xff]
    %v294 = vld [vmem:[%s1 + $0x80] sm:$0xff]
    %v295 = vld [vmem:[%s1 + $0x88] sm:$0xff]
    %v296 = vld [vmem:[%s1 + $0x90] sm:$0xff]
    %v297 = vld [vmem:[%s1 + $0x98] sm:$0xff]
    %v298 = vld [vmem:[%s1 + $0xa0] sm:$0xff]
    %v299 = vld [vmem:[%s1 + $0xa8] sm:$0xff]
    %v300 = vld [vmem:[%s1 + $0xb0] sm:$0xff]
    %v301 = vld [vmem:[%s1 + $0xb8] sm:$0xff]
    %v302 = vld [vmem:[%s1 + $0xc0] sm:$0xff]
    %v303 = vld [vmem:[%s1 + $0xc8] sm:$0xff]
    %v304 = vld [vmem:[%s1 + $0xd0] sm:$0xff]
    %v305 = vld [vmem:[%s1 + $0xd8] sm:$0xff]
    %v306 = vld [vmem:[%s1 + $0xe0] sm:$0xff]
    %v307 = vld [vmem:[%s1 + $0xe8] sm:$0xff]
    %v308 = vld [vmem:[%s1 + $0xf0] sm:$0xff]
    %v309 = vld [vmem:[%s1 + $0xf8] sm:$0xff]
    %v310 = vld [vmem:[%s1 + $0x100] sm:$0xff]
    %v311 = vld [vmem:[%s1 + $0x108] sm:$0xff]
    %v312 = vld [vmem:[%s1 + $0x110] sm:$0xff]
    %v313 = vld [vmem:[%s1 + $0x118] sm:$0xff]
    %v314 = vld [vmem:[%s1 + $0x120] sm:$0xff]
    %v315 = vld [vmem:[%s1 + $0x128] sm:$0xff]
    %v316 = vld [vmem:[%s1 + $0x130] sm:$0xff]
    %v317 = vld [vmem:[%s1 + $0x138] sm:$0xff]
    %v318 = vld [vmem:[%s1 + $0x140] sm:$0xff]
    %v319 = vld [vmem:[%s1 + $0x148] sm:$0xff]
    %v320 = vld [vmem:[%s1 + $0x150] sm:$0xff]
    %v321 = vld [vmem:[%s1 + $0x158] sm:$0xff]
    %v322 = vld [vmem:[%s1 + $0x160] sm:$0xff]
    %v323 = vld [vmem:[%s1 + $0x168] sm:$0xff]
    %v324 = vld [vmem:[%s1 + $0x170] sm:$0xff]
    %v325 = vld [vmem:[%s1 + $0x178] sm:$0xff]
    %v326 = vld [vmem:[%s1 + $0x180] sm:$0xff]
    %v327 = vld [vmem:[%s1 + $0x188] sm:$0xff]
    %v328 = vld [vmem:[%s1 + $0x190] sm:$0xff]
    %v329 = vld [vmem:[%s1 + $0x198] sm:$0xff]
    %v330 = vld [vmem:[%s1 + $0x1a0] sm:$0xff]
    %v331 = vld [vmem:[%s1 + $0x1a8] sm:$0xff]
    %v332 = vld [vmem:[%s1 + $0x1b0] sm:$0xff]
    %v333 = vld [vmem:[%s1 + $0x1b8] sm:$0xff]
    %v334 = vld [vmem:[%s1 + $0x1c0] sm:$0xff]
    %v335 = vld [vmem:[%s1 + $0x1c8] sm:$0xff]
    %v336 = vld [vmem:[%s1 + $0x1d0] sm:$0xff]
    %v337 = vld [vmem:[%s1 + $0x1d8] sm:$0xff]
    %v338 = vld [vmem:[%s1 + $0x1e0] sm:$0xff]
    %v339 = vld [vmem:[%s1 + $0x1e8] sm:$0xff]
    %v340 = vld [vmem:[%s1 + $0x1f0] sm:$0xff]
    %v341 = vld [vmem:[%s1 + $0x1f8] sm:$0xff]
    %v342 = vld [vmem:[%s1 + $0x200] sm:$0xff]
    %v343 = vld [vmem:[%s1 + $0x208] sm:$0xff]
    %v344 = vld [vmem:[%s1 + $0x210] sm:$0xff]
    %v345 = vld [vmem:[%s1 + $0x218] sm:$0xff]
    %v346 = vld [vmem:[%s1 + $0x220] sm:$0xff]
    %v347 = vld [vmem:[%s1 + $0x228] sm:$0xff]
    %v348 = vld [vmem:[%s1 + $0x230] sm:$0xff]
    %v349 = vld [vmem:[%s1 + $0x238] sm:$0xff]
    %v350 = vld [vmem:[%s1 + $0x240] sm:$0xff]
    %v351 = vld [vmem:[%s1 + $0x248] sm:$0xff]
    %v352 = vld [vmem:[%s1 + $0x250] sm:$0xff]
    %v353 = vld [vmem:[%s1 + $0x258] sm:$0xff]
    %v354 = vld [vmem:[%s1 + $0x260] sm:$0xff]
    %v355 = vld [vmem:[%s1 + $0x268] sm:$0xff]
    %v356 = vld [vmem:[%s1 + $0x270] sm:$0xff]
    %v357 = vld [vmem:[%s1 + $0x278] sm:$0xff]
    %v358 = vld [vmem:[%s1 + $0x280] sm:$0xff]
    %v359 = vld [vmem:[%s1 + $0x288] sm:$0xff]
    %v360 = vld [vmem:[%s1 + $0x290] sm:$0xff]
    %v361 = vld [vmem:[%s1 + $0x298] sm:$0xff]
    %v362 = vld [vmem:[%s1 + $0x2a0] sm:$0xff]
    %v363 = vld [vmem:[%s1 + $0x2a8] sm:$0xff]
    %v364 = vld [vmem:[%s1 + $0x2b0] sm:$0xff]
    %v365 = vld [vmem:[%s1 + $0x2b8] sm:$0xff]
    %v366 = vld [vmem:[%s1 + $0x2c0] sm:$0xff]
    %v367 = vld [vmem:[%s1 + $0x2c8] sm:$0xff]
    %v368 = vld [vmem:[%s1 + $0x2d0] sm:$0xff]
    %v369 = vld [vmem:[%s1 + $0x2d8] sm:$0xff]
    %v370 = vld [vmem:[%s1 + $0x2e0] sm:$0xff]
    %v371 = vld [vmem:[%s1 + $0x2e8] sm:$0xff]
    %v372 = vld [vmem:[%s1 + $0x2f0] sm:$0xff]
    %v373 = vld [vmem:[%s1 + $0x2f8] sm:$0xff]
    %v374 = vld [vmem:[%s1 + $0x300] sm:$0xff]
    %v375 = vld [vmem:[%s1 + $0x308] sm:$0xff]
    %v376 = vld [vmem:[%s1 + $0x310] sm:$0xff]
    %v377 = vld [vmem:[%s1 + $0x318] sm:$0xff]
    %v378 = vld [vmem:[%s1 + $0x320] sm:$0xff]
    %v379 = vld [vmem:[%s1 + $0x328] sm:$0xff]
    %v380 = vld [vmem:[%s1 + $0x330] sm:$0xff]
    %v381 = vld [vmem:[%s1 + $0x338] sm:$0xff]
    %v382 = vld [vmem:[%s1 + $0x340] sm:$0xff]
    %v383 = vld [vmem:[%s1 + $0x348] sm:$0xff]
    %v384 = vld [vmem:[%s1 + $0x350] sm:$0xff]
    %v385 = vld [vmem:[%s1 + $0x358] sm:$0xff]
    %v386 = vld [vmem:[%s1 + $0x360] sm:$0xff]
    %v387 = vld [vmem:[%s1 + $0x368] sm:$0xff]
    %v388 = vld [vmem:[%s1 + $0x370] sm:$0xff]
    %v389 = vld [vmem:[%s1 + $0x378] sm:$0xff]
    %v390 = vld [vmem:[%s1 + $0x380] sm:$0xff]
    %v391 = vld [vmem:[%s1 + $0x388] sm:$0xff]
    %v392 = vld [vmem:[%s1 + $0x390] sm:$0xff]
    %v393 = vld [vmem:[%s1 + $0x398] sm:$0xff]
    %v394 = vld [vmem:[%s1 + $0x3a0] sm:$0xff]
    %v395 = vld [vmem:[%s1 + $0x3a8] sm:$0xff]
    %v396 = vld [vmem:[%s1 + $0x3b0] sm:$0xff]
    %v397 = vld [vmem:[%s1 + $0x3b8] sm:$0xff]
    %v398 = vld [vmem:[%s1 + $0x3c0] sm:$0xff]
    %v399 = vld [vmem:[%s1 + $0x3c8] sm:$0xff]
    %v400 = vld [vmem:[%s1 + $0x3d0] sm:$0xff]
    %v401 = vld [vmem:[%s1 + $0x3d8] sm:$0xff]
    %v402 = vld [vmem:[%s1 + $0x3e0] sm:$0xff]
    %v403 = vld [vmem:[%s1 + $0x3e8] sm:$0xff]
    %v404 = vld [vmem:[%s1 + $0x3f0] sm:$0xff]
    %v405 = vld [vmem:[%s1 + $0x3f8] sm:$0xff]
    %406 = vmatprep.subr.mxu0 %v279
    %407 = vmatpush1.msra.mxu0 %v278
    %408 = vmatprep.subr.mxu0 %v283
    %409 = vmatpush1.msra.mxu0 %v282
    %410 = vmatprep.subr.mxu0 %v287
    %411 = vmatpush1.msra.mxu0 %v286
    %412 = vmatprep.subr.mxu0 %v291
    %413 = vmatpush1.msra.mxu0 %v290
    %414 = vmatprep.subr.mxu0 %v295
    %415 = vmatpush1.msra.mxu0 %v294
    %416 = vmatprep.subr.mxu0 %v299
    %417 = vmatpush1.msra.mxu0 %v298
    %418 = vmatprep.subr.mxu0 %v303
    %419 = vmatpush1.msra.mxu0 %v302
    %420 = vmatprep.subr.mxu0 %v307
    %421 = vmatpush1.msra.mxu0 %v306
    %422 = vmatprep.subr.mxu0 %v311
    %423 = vmatpush1.msra.mxu0 %v310
    %424 = vmatprep.subr.mxu0 %v315
    %425 = vmatpush1.msra.mxu0 %v314
    %426 = vmatprep.subr.mxu0 %v319
    %427 = vmatpush1.msra.mxu0 %v318
    %428 = vmatprep.subr.mxu0 %v323
    %429 = vmatpush1.msra.mxu0 %v322
    %430 = vmatprep.subr.mxu0 %v327
    %431 = vmatpush1.msra.mxu0 %v326
    %432 = vmatprep.subr.mxu0 %v331
    %433 = vmatpush1.msra.mxu0 %v330
    %434 = vmatprep.subr.mxu0 %v335
    %435 = vmatpush1.msra.mxu0 %v334
    %436 = vmatprep.subr.mxu0 %v339
    %437 = vmatpush1.msra.mxu0 %v338
    %438 = vmatprep.subr.mxu0 %v343
    %439 = vmatpush1.msra.mxu0 %v342
    %440 = vmatprep.subr.mxu0 %v347
    %441 = vmatpush1.msra.mxu0 %v346
    %442 = vmatprep.subr.mxu0 %v351
    %443 = vmatpush1.msra.mxu0 %v350
    %444 = vmatprep.subr.mxu0 %v355
    %445 = vmatpush1.msra.mxu0 %v354
    %446 = vmatprep.subr.mxu0 %v359
    %447 = vmatpush1.msra.mxu0 %v358
    %448 = vmatprep.subr.mxu0 %v363
    %449 = vmatpush1.msra.mxu0 %v362
    %450 = vmatprep.subr.mxu0 %v367
    %451 = vmatpush1.msra.mxu0 %v366
    %452 = vmatprep.subr.mxu0 %v371
    %453 = vmatpush1.msra.mxu0 %v370
    %454 = vmatprep.subr.mxu0 %v375
    %455 = vmatpush1.msra.mxu0 %v374
    %456 = vmatprep.subr.mxu0 %v379
    %457 = vmatpush1.msra.mxu0 %v378
    %458 = vmatprep.subr.mxu0 %v383
    %459 = vmatpush1.msra.mxu0 %v382
    %460 = vmatprep.subr.mxu0 %v387
    %461 = vmatpush1.msra.mxu0 %v386
    %462 = vmatprep.subr.mxu0 %v391
    %463 = vmatpush1.msra.mxu0 %v390
    %464 = vmatprep.subr.mxu0 %v395
    %465 = vmatpush1.msra.mxu0 %v394
    %466 = vmatprep.subr.mxu0 %v399
    %467 = vmatpush1.msra.mxu0 %v398
    %468 = vmatprep.subr.mxu0 %v403
    %469 = vmatpush1.msra.mxu0 %v402
    %470 = vmatprep.mubr.f32.mxu0 %v265
    %471 = vmatmul.mubr.f32.gmra.mrb[0].mxu0 %v264
    %v472 = vpop.f32.mrb[0].mxu0
    %v473 = vadd.f32 0.0, %v472
    %v474 = vpop.f32.mrb[0].mxu0
    %v475 = vadd.f32 0.0, %v474
    %476 = vmatprep.mubr.f32.mxu0 %v267
    %477 = vmatmul.mubr.f32.gmra.mrb[0].mxu0 %v266
    %v478 = vpop.f32.mrb[0].mxu0
    %v479 = vadd.f32 0.0, %v478
    %v480 = vpop.f32.mrb[0].mxu0
    %v481 = vadd.f32 0.0, %v480
    %482 = vmatprep.mubr.f32.mxu0 %v269
    %483 = vmatmul.mubr.f32.gmra.mrb[0].mxu0 %v268
    %v484 = vpop.f32.mrb[0].mxu0
    %v485 = vadd.f32 0.0, %v484
    %v486 = vpop.f32.mrb[0].mxu0
    %v487 = vadd.f32 0.0, %v486
    %488 = vmatprep.mubr.f32.mxu0 %v271
    %489 = vmatmul.mubr.f32.gmra.mrb[0].mxu0 %v270
    %v490 = vpop.f32.mrb[0].mxu0
    %v491 = vadd.f32 0.0, %v490
    %v492 = vpop.f32.mrb[0].mxu0
    %v493 = vadd.f32 0.0, %v492
    %494 = vmatprep.mubr.f32.mxu0 %v273
    %495 = vmatmul.mubr.f32.gmra.mrb[0].mxu0 %v272
    %v496 = vpop.f32.mrb[0].mxu0
    %v497 = vadd.f32 0.0, %v496
    %v498 = vpop.f32.mrb[0].mxu0
    %v499 = vadd.f32 0.0, %v498
    %500 = vmatprep.mubr.f32.mxu0 %v275
    %501 = vmatmul.mubr.f32.gmra.mrb[0].mxu0 %v274
    %v502 = vpop.f32.mrb[0].mxu0
    %v503 = vadd.f32 0.0, %v502
    %v504 = vpop.f32.mrb[0].mxu0
    %v505 = vadd.f32 0.0, %v504
    %506 = vmatprep.mubr.f32.mxu0 %v277
    %507 = vmatmul.mubr.f32.gmra.mrb[0].mxu0 %v276
    %v508 = vpop.f32.mrb[0].mxu0
    %v509 = vadd.f32 0.0, %v508
    %v510 = vpop.f32.mrb[0].mxu0
    %v511 = vadd.f32 0.0, %v510
    %512 = vdwg.mxu0
    %513 = vmatprep.subr.mxu0 %v281
    %514 = vmatpush1.msra.mxu0 %v280
    %515 = vmatprep.subr.mxu0 %v285
    %516 = vmatpush1.msra.mxu0 %v284
    %517 = vmatprep.subr.mxu0 %v289
    %518 = vmatpush1.msra.mxu0 %v288
    %519 = vmatprep.subr.mxu0 %v293
    %520 = vmatpush1.msra.mxu0 %v292
    %521 = vmatprep.subr.mxu0 %v297
    %522 = vmatpush1.msra.mxu0 %v296
    %523 = vmatprep.subr.mxu0 %v301
    %524 = vmatpush1.msra.mxu0 %v300
    %525 = vmatprep.subr.mxu0 %v305
    %526 = vmatpush1.msra.mxu0 %v304
    %527 = vmatprep.subr.mxu0 %v309
    %528 = vmatpush1.msra.mxu0 %v308
    %529 = vmatprep.subr.mxu0 %v313
    %530 = vmatpush1.msra.mxu0 %v312
    %531 = vmatprep.subr.mxu0 %v317
    %532 = vmatpush1.msra.mxu0 %v316
    %533 = vmatprep.subr.mxu0 %v321
    %534 = vmatpush1.msra.mxu0 %v320
    %535 = vmatprep.subr.mxu0 %v325
    %536 = vmatpush1.msra.mxu0 %v324
    %537 = vmatprep.subr.mxu0 %v329
    %538 = vmatpush1.msra.mxu0 %v328
    %539 = vmatprep.subr.mxu0 %v333
    %540 = vmatpush1.msra.mxu0 %v332
    %541 = vmatprep.subr.mxu0 %v337
    %542 = vmatpush1.msra.mxu0 %v336
    %543 = vmatprep.subr.mxu0 %v341
    %544 = vmatpush1.msra.mxu0 %v340
    %545 = vmatprep.subr.mxu0 %v345
    %546 = vmatpush1.msra.mxu0 %v344
    %547 = vmatprep.subr.mxu0 %v349
    %548 = vmatpush1.msra.mxu0 %v348
    %549 = vmatprep.subr.mxu0 %v353
    %550 = vmatpush1.msra.mxu0 %v352
    %551 = vmatprep.subr.mxu0 %v357
    %552 = vmatpush1.msra.mxu0 %v356
    %553 = vmatprep.subr.mxu0 %v361
    %554 = vmatpush1.msra.mxu0 %v360
    %555 = vmatprep.subr.mxu0 %v365
    %556 = vmatpush1.msra.mxu0 %v364
    %557 = vmatprep.subr.mxu0 %v369
    %558 = vmatpush1.msra.mxu0 %v368
    %559 = vmatprep.subr.mxu0 %v373
    %560 = vmatpush1.msra.mxu0 %v372
    %561 = vmatprep.subr.mxu0 %v377
    %562 = vmatpush1.msra.mxu0 %v376
    %563 = vmatprep.subr.mxu0 %v381
    %564 = vmatpush1.msra.mxu0 %v380
    %565 = vmatprep.subr.mxu0 %v385
    %566 = vmatpush1.msra.mxu0 %v384
    %567 = vmatprep.subr.mxu0 %v389
    %568 = vmatpush1.msra.mxu0 %v388
    %569 = vmatprep.subr.mxu0 %v393
    %570 = vmatpush1.msra.mxu0 %v392
    %571 = vmatprep.subr.mxu0 %v397
    %572 = vmatpush1.msra.mxu0 %v396
    %573 = vmatprep.subr.mxu0 %v401
    %574 = vmatpush1.msra.mxu0 %v400
    %575 = vmatprep.subr.mxu0 %v405
    %576 = vmatpush1.msra.mxu0 %v404
    %577 = vmatprep.mubr.f32.mxu0 %v265
    %578 = vmatmul.mubr.f32.gmra.mrb[0].mxu0 %v264
    %v579 = vpop.f32.mrb[0].mxu0
    %v580 = vadd.f32 0.0, %v579
    %v581 = vpop.f32.mrb[0].mxu0
    %v582 = vadd.f32 0.0, %v581
    %583 = vmatprep.mubr.f32.mxu0 %v267
    %584 = vmatmul.mubr.f32.gmra.mrb[0].mxu0 %v266
    %v585 = vpop.f32.mrb[0].mxu0
    %v586 = vadd.f32 0.0, %v585
    %v587 = vpop.f32.mrb[0].mxu0
    %v588 = vadd.f32 0.0, %v587
    %589 = vmatprep.mubr.f32.mxu0 %v269
    %590 = vmatmul.mubr.f32.gmra.mrb[0].mxu0 %v268
    %v591 = vpop.f32.mrb[0].mxu0
    %v592 = vadd.f32 0.0, %v591
    %v593 = vpop.f32.mrb[0].mxu0
    %v594 = vadd.f32 0.0, %v593
    %595 = vmatprep.mubr.f32.mxu0 %v271
    %596 = vmatmul.mubr.f32.gmra.mrb[0].mxu0 %v270
    %v597 = vpop.f32.mrb[0].mxu0
    %v598 = vadd.f32 0.0, %v597
    %v599 = vpop.f32.mrb[0].mxu0
    %v600 = vadd.f32 0.0, %v599
    %601 = vmatprep.mubr.f32.mxu0 %v273
    %602 = vmatmul.mubr.f32.gmra.mrb[0].mxu0 %v272
    %v603 = vpop.f32.mrb[0].mxu0
    %v604 = vadd.f32 0.0, %v603
    %v605 = vpop.f32.mrb[0].mxu0
    %v606 = vadd.f32 0.0, %v605
    %607 = vmatprep.mubr.f32.mxu0 %v275
    %608 = vmatmul.mubr.f32.gmra.mrb[0].mxu0 %v274
    %v609 = vpop.f32.mrb[0].mxu0
    %v610 = vadd.f32 0.0, %v609
    %v611 = vpop.f32.mrb[0].mxu0
    %v612 = vadd.f32 0.0, %v611
    %613 = vmatprep.mubr.f32.mxu0 %v277
    %614 = vmatmul.mubr.f32.gmra.mrb[0].mxu0 %v276
    %v615 = vpop.f32.mrb[0].mxu0
    %v616 = vadd.f32 0.0, %v615
    %v617 = vpop.f32.mrb[0].mxu0
    %v618 = vadd.f32 0.0, %v617
    %619 = vdwg.mxu0
    %v620 = vlaneseq
    %v621 = vshrl.u32 %v620, 7
    %v622 = vsub.s32 0, %v621
    %v623 = vrot.slane %v246, %v622
    %v624 = vmul.f32 %v473, %v623
    %v625 = vmul.f32 %v475, %v623
    %v626 = vmul.f32 %v580, %v623
    %v627 = vmul.f32 %v582, %v623
    %v628 = vmul.f32 %v479, %v623
    %v629 = vmul.f32 %v481, %v623
    %v630 = vmul.f32 %v586, %v623
    %v631 = vmul.f32 %v588, %v623
    %v632 = vmul.f32 %v485, %v623
    %v633 = vmul.f32 %v487, %v623
    %v634 = vmul.f32 %v592, %v623
    %v635 = vmul.f32 %v594, %v623
    %v636 = vmul.f32 %v491, %v623
    %v637 = vmul.f32 %v493, %v623
    %v638 = vmul.f32 %v598, %v623
    %v639 = vmul.f32 %v600, %v623
    %v640 = vmul.f32 %v497, %v623
    %v641 = vmul.f32 %v499, %v623
    %v642 = vmul.f32 %v604, %v623
    %v643 = vmul.f32 %v606, %v623
    %v644 = vmul.f32 %v503, %v623
    %v645 = vmul.f32 %v505, %v623
    %v646 = vmul.f32 %v610, %v623
    %v647 = vmul.f32 %v612, %v623
    %v648 = vmul.f32 %v509, %v623
    %v649 = vmul.f32 %v511, %v623
    %v650 = vmul.f32 %v616, %v623
    %v651 = vmul.f32 %v618, %v623
    %v652 = vlaneseq
    %v653 = vshrl.u32 %v652, 7
    %v654 = vsub.s32 0, %v653
    %v655 = vrot.slane %v263, %v654
    %v656 = vadd.f32 %v624, %v655
    %v657 = vadd.f32 %v625, %v655
    %v658 = vadd.f32 %v626, %v655
    %v659 = vadd.f32 %v627, %v655
    %v660 = vadd.f32 %v628, %v655
    %v661 = vadd.f32 %v629, %v655
    %v662 = vadd.f32 %v630, %v655
    %v663 = vadd.f32 %v631, %v655
    %v664 = vadd.f32 %v632, %v655
    %v665 = vadd.f32 %v633, %v655
    %v666 = vadd.f32 %v634, %v655
    %v667 = vadd.f32 %v635, %v655
    %v668 = vadd.f32 %v636, %v655
    %v669 = vadd.f32 %v637, %v655
    %v670 = vadd.f32 %v638, %v655
    %v671 = vadd.f32 %v639, %v655
    %v672 = vadd.f32 %v640, %v655
    %v673 = vadd.f32 %v641, %v655
    %v674 = vadd.f32 %v642, %v655
    %v675 = vadd.f32 %v643, %v655
    %v676 = vadd.f32 %v644, %v655
    %v677 = vadd.f32 %v645, %v655
    %v678 = vadd.f32 %v646, %v655
    %v679 = vadd.f32 %v647, %v655
    %v680 = vadd.f32 %v648, %v655
    %v681 = vadd.f32 %v649, %v655
    %v682 = vadd.f32 %v650, %v655
    %v683 = vadd.f32 %v651, %v655
    %v684 = vmul.f32 %v656, 0.2
    %v685 = vmul.f32 %v657, 0.2
    %v686 = vmul.f32 %v658, 0.2
    %v687 = vmul.f32 %v659, 0.2
    %v688 = vmul.f32 %v660, 0.2
    %v689 = vmul.f32 %v661, 0.2
    %v690 = vmul.f32 %v662, 0.2
    %v691 = vmul.f32 %v663, 0.2
    %v692 = vmul.f32 %v664, 0.2
    %v693 = vmul.f32 %v665, 0.2
    %v694 = vmul.f32 %v666, 0.2
    %v695 = vmul.f32 %v667, 0.2
    %v696 = vmul.f32 %v668, 0.2
    %v697 = vmul.f32 %v669, 0.2
    %v698 = vmul.f32 %v670, 0.2
    %v699 = vmul.f32 %v671, 0.2
    %v700 = vmul.f32 %v672, 0.2
    %v701 = vmul.f32 %v673, 0.2
    %v702 = vmul.f32 %v674, 0.2
    %v703 = vmul.f32 %v675, 0.2
    %v704 = vmul.f32 %v676, 0.2
    %v705 = vmul.f32 %v677, 0.2
    %v706 = vmul.f32 %v678, 0.2
    %v707 = vmul.f32 %v679, 0.2
    %v708 = vmul.f32 %v680, 0.2
    %v709 = vmul.f32 %v681, 0.2
    %v710 = vmul.f32 %v682, 0.2
    %v711 = vmul.f32 %v683, 0.2
    %v712 = vmax.f32 %v656, %v684
    %v713 = vmax.f32 %v657, %v685
    %v714 = vmax.f32 %v658, %v686
    %v715 = vmax.f32 %v659, %v687
    %v716 = vmax.f32 %v660, %v688
    %v717 = vmax.f32 %v661, %v689
    %v718 = vmax.f32 %v662, %v690
    %v719 = vmax.f32 %v663, %v691
    %v720 = vmax.f32 %v664, %v692
    %v721 = vmax.f32 %v665, %v693
    %v722 = vmax.f32 %v666, %v694
    %v723 = vmax.f32 %v667, %v695
    %v724 = vmax.f32 %v668, %v696
    %v725 = vmax.f32 %v669, %v697
    %v726 = vmax.f32 %v670, %v698
    %v727 = vmax.f32 %v671, %v699
    %v728 = vmax.f32 %v672, %v700
    %v729 = vmax.f32 %v673, %v701
    %v730 = vmax.f32 %v674, %v702
    %v731 = vmax.f32 %v675, %v703
    %v732 = vmax.f32 %v676, %v704
    %v733 = vmax.f32 %v677, %v705
    %v734 = vmax.f32 %v678, %v706
    %v735 = vmax.f32 %v679, %v707
    %v736 = vmax.f32 %v680, %v708
    %v737 = vmax.f32 %v681, %v709
    %v738 = vmax.f32 %v682, %v710
    %v739 = vmax.f32 %v683, %v711
    %v740 = vld [vmem:[%s7] sm:$0xff]
    %v741 = vld [vmem:[%s7 + $0x8] sm:$0xff]
    %v742 = vld [vmem:[%s7 + $0x10] sm:$0xff]
    %v743 = vld [vmem:[%s7 + $0x18] sm:$0xff]
    %v744 = vld [vmem:[%s7 + $0x20] sm:$0xff]
    %v745 = vld [vmem:[%s7 + $0x28] sm:$0xff]
    %v746 = vld [vmem:[%s7 + $0x30] sm:$0xff]
    %v747 = vld [vmem:[%s7 + $0x38] sm:$0xff]
    %v748 = vld [vmem:[%s7 + $0x40] sm:$0xff]
    %v749 = vld [vmem:[%s7 + $0x48] sm:$0xff]
    %v750 = vld [vmem:[%s7 + $0x50] sm:$0xff]
    %v751 = vld [vmem:[%s7 + $0x58] sm:$0xff]
    %v752 = vld [vmem:[%s7 + $0x60] sm:$0xff]
    %v753 = vld [vmem:[%s7 + $0x68] sm:$0xff]
    %v754 = vld [vmem:[%s7 + $0x70] sm:$0xff]
    %v755 = vld [vmem:[%s7 + $0x78] sm:$0xff]
    %v756 = vld [vmem:[%s7 + $0x80] sm:$0xff]
    %v757 = vld [vmem:[%s7 + $0x88] sm:$0xff]
    %v758 = vld [vmem:[%s7 + $0x90] sm:$0xff]
    %v759 = vld [vmem:[%s7 + $0x98] sm:$0xff]
    %v760 = vld [vmem:[%s7 + $0xa0] sm:$0xff]
    %v761 = vld [vmem:[%s7 + $0xa8] sm:$0xff]
    %v762 = vld [vmem:[%s7 + $0xb0] sm:$0xff]
    %v763 = vld [vmem:[%s7 + $0xb8] sm:$0xff]
    %v764 = vld [vmem:[%s7 + $0xc0] sm:$0xff]
    %v765 = vld [vmem:[%s7 + $0xc8] sm:$0xff]
    %v766 = vld [vmem:[%s7 + $0xd0] sm:$0xff]
    %v767 = vld [vmem:[%s7 + $0xd8] sm:$0xff]
    %v768 = vld [vmem:[%s7 + $0xe0] sm:$0xff]
    %v769 = vld [vmem:[%s7 + $0xe8] sm:$0xff]
    %v770 = vld [vmem:[%s7 + $0xf0] sm:$0xff]
    %v771 = vld [vmem:[%s7 + $0xf8] sm:$0xff]
    %v772 = vld [vmem:[%s7 + $0x100] sm:$0xff]
    %v773 = vld [vmem:[%s7 + $0x108] sm:$0xff]
    %v774 = vld [vmem:[%s7 + $0x110] sm:$0xff]
    %v775 = vld [vmem:[%s7 + $0x118] sm:$0xff]
    %v776 = vld [vmem:[%s7 + $0x120] sm:$0xff]
    %v777 = vld [vmem:[%s7 + $0x128] sm:$0xff]
    %v778 = vld [vmem:[%s7 + $0x130] sm:$0xff]
    %v779 = vld [vmem:[%s7 + $0x138] sm:$0xff]
    %v780 = vld [vmem:[%s7 + $0x140] sm:$0xff]
    %v781 = vld [vmem:[%s7 + $0x148] sm:$0xff]
    %v782 = vld [vmem:[%s7 + $0x150] sm:$0xff]
    %v783 = vld [vmem:[%s7 + $0x158] sm:$0xff]
    %v784 = vld [vmem:[%s7 + $0x160] sm:$0xff]
    %v785 = vld [vmem:[%s7 + $0x168] sm:$0xff]
    %v786 = vld [vmem:[%s7 + $0x170] sm:$0xff]
    %v787 = vld [vmem:[%s7 + $0x178] sm:$0xff]
    %v788 = vld [vmem:[%s7 + $0x180] sm:$0xff]
    %v789 = vld [vmem:[%s7 + $0x188] sm:$0xff]
    %v790 = vld [vmem:[%s7 + $0x190] sm:$0xff]
    %v791 = vld [vmem:[%s7 + $0x198] sm:$0xff]
    %v792 = vld [vmem:[%s7 + $0x1a0] sm:$0xff]
    %v793 = vld [vmem:[%s7 + $0x1a8] sm:$0xff]
    %v794 = vld [vmem:[%s7 + $0x1b0] sm:$0xff]
    %v795 = vld [vmem:[%s7 + $0x1b8] sm:$0xff]
    %v796 = vld [vmem:[%s7 + $0x1c0] sm:$0xff]
    %v797 = vld [vmem:[%s7 + $0x1c8] sm:$0xff]
    %v798 = vld [vmem:[%s7 + $0x1d0] sm:$0xff]
    %v799 = vld [vmem:[%s7 + $0x1d8] sm:$0xff]
    %v800 = vld [vmem:[%s7 + $0x1e0] sm:$0xff]
    %v801 = vld [vmem:[%s7 + $0x1e8] sm:$0xff]
    %v802 = vld [vmem:[%s7 + $0x1f0] sm:$0xff]
    %v803 = vld [vmem:[%s7 + $0x1f8] sm:$0xff]
    %804 = vmatprep.subr.mxu0 0.0
    %805 = vmatpush1.msra.mxu0 %v740
    %806 = vmatprep.subr.mxu0 0.0
    %807 = vmatpush1.msra.mxu0 %v741
    %808 = vmatprep.subr.mxu0 0.0
    %809 = vmatpush1.msra.mxu0 %v742
    %810 = vmatprep.subr.mxu0 0.0
    %811 = vmatpush1.msra.mxu0 %v743
    %812 = vmatprep.subr.mxu0 0.0
    %813 = vmatpush1.msra.mxu0 %v744
    %814 = vmatprep.subr.mxu0 0.0
    %815 = vmatpush1.msra.mxu0 %v745
    %816 = vmatprep.subr.mxu0 0.0
    %817 = vmatpush1.msra.mxu0 %v746
    %818 = vmatprep.subr.mxu0 0.0
    %819 = vmatpush1.msra.mxu0 %v747
    %820 = vmatprep.subr.mxu0 0.0
    %821 = vmatpush1.msra.mxu0 %v748
    %822 = vmatprep.subr.mxu0 0.0
    %823 = vmatpush1.msra.mxu0 %v749
    %824 = vmatprep.subr.mxu0 0.0
    %825 = vmatpush1.msra.mxu0 %v750
    %826 = vmatprep.subr.mxu0 0.0
    %827 = vmatpush1.msra.mxu0 %v751
    %828 = vmatprep.subr.mxu0 0.0
    %829 = vmatpush1.msra.mxu0 %v752
    %830 = vmatprep.subr.mxu0 0.0
    %831 = vmatpush1.msra.mxu0 %v753
    %832 = vmatprep.subr.mxu0 0.0
    %833 = vmatpush1.msra.mxu0 %v754
    %834 = vmatprep.subr.mxu0 0.0
    %835 = vmatpush1.msra.mxu0 %v755
    %836 = vmatprep.subr.mxu0 0.0
    %837 = vmatpush1.msra.mxu0 %v756
    %838 = vmatprep.subr.mxu0 0.0
    %839 = vmatpush1.msra.mxu0 %v757
    %840 = vmatprep.subr.mxu0 0.0
    %841 = vmatpush1.msra.mxu0 %v758
    %842 = vmatprep.subr.mxu0 0.0
    %843 = vmatpush1.msra.mxu0 %v759
    %844 = vmatprep.subr.mxu0 0.0
    %845 = vmatpush1.msra.mxu0 %v760
    %846 = vmatprep.subr.mxu0 0.0
    %847 = vmatpush1.msra.mxu0 %v761
    %848 = vmatprep.subr.mxu0 0.0
    %849 = vmatpush1.msra.mxu0 %v762
    %850 = vmatprep.subr.mxu0 0.0
    %851 = vmatpush1.msra.mxu0 %v763
    %852 = vmatprep.subr.mxu0 0.0
    %853 = vmatpush1.msra.mxu0 %v764
    %854 = vmatprep.subr.mxu0 0.0
    %855 = vmatpush1.msra.mxu0 %v765
    %856 = vmatprep.subr.mxu0 0.0
    %857 = vmatpush1.msra.mxu0 %v766
    %858 = vmatprep.subr.mxu0 0.0
    %859 = vmatpush1.msra.mxu0 %v767
    %860 = vmatprep.subr.mxu0 0.0
    %861 = vmatpush1.msra.mxu0 %v768
    %862 = vmatprep.subr.mxu0 0.0
    %863 = vmatpush1.msra.mxu0 %v769
    %864 = vmatprep.subr.mxu0 0.0
    %865 = vmatpush1.msra.mxu0 %v770
    %866 = vmatprep.subr.mxu0 0.0
    %867 = vmatpush1.msra.mxu0 %v771
    %868 = vmatprep.mubr.f32.mxu0 %v713
    %869 = vmatmul.mubr.f32.gmra.mrb[0].mxu0 %v712
    %v870 = vpop.f32.mrb[0].mxu0
    %v871 = vadd.f32 0.0, %v870
    %v872 = vpop.f32.mrb[0].mxu0
    %873 = vmatprep.mubr.f32.mxu0 %v717
    %874 = vmatmul.mubr.f32.gmra.mrb[0].mxu0 %v716
    %v875 = vpop.f32.mrb[0].mxu0
    %v876 = vadd.f32 0.0, %v875
    %v877 = vpop.f32.mrb[0].mxu0
    %878 = vmatprep.mubr.f32.mxu0 %v721
    %879 = vmatmul.mubr.f32.gmra.mrb[0].mxu0 %v720
    %v880 = vpop.f32.mrb[0].mxu0
    %v881 = vadd.f32 0.0, %v880
    %v882 = vpop.f32.mrb[0].mxu0
    %883 = vmatprep.mubr.f32.mxu0 %v725
    %884 = vmatmul.mubr.f32.gmra.mrb[0].mxu0 %v724
    %v885 = vpop.f32.mrb[0].mxu0
    %v886 = vadd.f32 0.0, %v885
    %v887 = vpop.f32.mrb[0].mxu0
    %888 = vmatprep.mubr.f32.mxu0 %v729
    %889 = vmatmul.mubr.f32.gmra.mrb[0].mxu0 %v728
    %v890 = vpop.f32.mrb[0].mxu0
    %v891 = vadd.f32 0.0, %v890
    %v892 = vpop.f32.mrb[0].mxu0
    %893 = vmatprep.mubr.f32.mxu0 %v733
    %894 = vmatmul.mubr.f32.gmra.mrb[0].mxu0 %v732
    %v895 = vpop.f32.mrb[0].mxu0
    %v896 = vadd.f32 0.0, %v895
    %v897 = vpop.f32.mrb[0].mxu0
    %898 = vmatprep.mubr.f32.mxu0 %v737
    %899 = vmatmul.mubr.f32.gmra.mrb[0].mxu0 %v736
    %v900 = vpop.f32.mrb[0].mxu0
    %v901 = vadd.f32 0.0, %v900
    %v902 = vpop.f32.mrb[0].mxu0
    %903 = vdwg.mxu0
    %904 = vmatprep.subr.mxu0 0.0
    %905 = vmatpush1.msra.mxu0 %v772
    %906 = vmatprep.subr.mxu0 0.0
    %907 = vmatpush1.msra.mxu0 %v773
    %908 = vmatprep.subr.mxu0 0.0
    %909 = vmatpush1.msra.mxu0 %v774
    %910 = vmatprep.subr.mxu0 0.0
    %911 = vmatpush1.msra.mxu0 %v775
    %912 = vmatprep.subr.mxu0 0.0
    %913 = vmatpush1.msra.mxu0 %v776
    %914 = vmatprep.subr.mxu0 0.0
    %915 = vmatpush1.msra.mxu0 %v777
    %916 = vmatprep.subr.mxu0 0.0
    %917 = vmatpush1.msra.mxu0 %v778
    %918 = vmatprep.subr.mxu0 0.0
    %919 = vmatpush1.msra.mxu0 %v779
    %920 = vmatprep.subr.mxu0 0.0
    %921 = vmatpush1.msra.mxu0 %v780
    %922 = vmatprep.subr.mxu0 0.0
    %923 = vmatpush1.msra.mxu0 %v781
    %924 = vmatprep.subr.mxu0 0.0
    %925 = vmatpush1.msra.mxu0 %v782
    %926 = vmatprep.subr.mxu0 0.0
    %927 = vmatpush1.msra.mxu0 %v783
    %928 = vmatprep.subr.mxu0 0.0
    %929 = vmatpush1.msra.mxu0 %v784
    %930 = vmatprep.subr.mxu0 0.0
    %931 = vmatpush1.msra.mxu0 %v785
    %932 = vmatprep.subr.mxu0 0.0
    %933 = vmatpush1.msra.mxu0 %v786
    %934 = vmatprep.subr.mxu0 0.0
    %935 = vmatpush1.msra.mxu0 %v787
    %936 = vmatprep.subr.mxu0 0.0
    %937 = vmatpush1.msra.mxu0 %v788
    %938 = vmatprep.subr.mxu0 0.0
    %939 = vmatpush1.msra.mxu0 %v789
    %940 = vmatprep.subr.mxu0 0.0
    %941 = vmatpush1.msra.mxu0 %v790
    %942 = vmatprep.subr.mxu0 0.0
    %943 = vmatpush1.msra.mxu0 %v791
    %944 = vmatprep.subr.mxu0 0.0
    %945 = vmatpush1.msra.mxu0 %v792
    %946 = vmatprep.subr.mxu0 0.0
    %947 = vmatpush1.msra.mxu0 %v793
    %948 = vmatprep.subr.mxu0 0.0
    %949 = vmatpush1.msra.mxu0 %v794
    %950 = vmatprep.subr.mxu0 0.0
    %951 = vmatpush1.msra.mxu0 %v795
    %952 = vmatprep.subr.mxu0 0.0
    %953 = vmatpush1.msra.mxu0 %v796
    %954 = vmatprep.subr.mxu0 0.0
    %955 = vmatpush1.msra.mxu0 %v797
    %956 = vmatprep.subr.mxu0 0.0
    %957 = vmatpush1.msra.mxu0 %v798
    %958 = vmatprep.subr.mxu0 0.0
    %959 = vmatpush1.msra.mxu0 %v799
    %960 = vmatprep.subr.mxu0 0.0
    %961 = vmatpush1.msra.mxu0 %v800
    %962 = vmatprep.subr.mxu0 0.0
    %963 = vmatpush1.msra.mxu0 %v801
    %964 = vmatprep.subr.mxu0 0.0
    %965 = vmatpush1.msra.mxu0 %v802
    %966 = vmatprep.subr.mxu0 0.0
    %967 = vmatpush1.msra.mxu0 %v803
    %968 = vmatprep.mubr.f32.mxu0 %v715
    %969 = vmatmul.mubr.f32.gmra.mrb[0].mxu0 %v714
    %v970 = vpop.f32.mrb[0].mxu0
    %v971 = vadd.f32 %v871, %v970
    %v972 = vpop.f32.mrb[0].mxu0
    %973 = vmatprep.mubr.f32.mxu0 %v719
    %974 = vmatmul.mubr.f32.gmra.mrb[0].mxu0 %v718
    %v975 = vpop.f32.mrb[0].mxu0
    %v976 = vadd.f32 %v876, %v975
    %v977 = vpop.f32.mrb[0].mxu0
    %978 = vmatprep.mubr.f32.mxu0 %v723
    %979 = vmatmul.mubr.f32.gmra.mrb[0].mxu0 %v722
    %v980 = vpop.f32.mrb[0].mxu0
    %v981 = vadd.f32 %v881, %v980
    %v982 = vpop.f32.mrb[0].mxu0
    %983 = vmatprep.mubr.f32.mxu0 %v727
    %984 = vmatmul.mubr.f32.gmra.mrb[0].mxu0 %v726
    %v985 = vpop.f32.mrb[0].mxu0
    %v986 = vadd.f32 %v886, %v985
    %v987 = vpop.f32.mrb[0].mxu0
    %988 = vmatprep.mubr.f32.mxu0 %v731
    %989 = vmatmul.mubr.f32.gmra.mrb[0].mxu0 %v730
    %v990 = vpop.f32.mrb[0].mxu0
    %v991 = vadd.f32 %v891, %v990
    %v992 = vpop.f32.mrb[0].mxu0
    %993 = vmatprep.mubr.f32.mxu0 %v735
    %994 = vmatmul.mubr.f32.gmra.mrb[0].mxu0 %v734
    %v995 = vpop.f32.mrb[0].mxu0
    %v996 = vadd.f32 %v896, %v995
    %v997 = vpop.f32.mrb[0].mxu0
    %998 = vmatprep.mubr.f32.mxu0 %v739
    %999 = vmatmul.mubr.f32.gmra.mrb[0].mxu0 %v738
    %v1000 = vpop.f32.mrb[0].mxu0
    %v1001 = vadd.f32 %v901, %v1000
    %v1002 = vpop.f32.mrb[0].mxu0
    %1003 = vdwg.mxu0
    %v1004 = vsel %vm243, %v971, 0.0
    %v1005 = vsel %vm243, %v976, 0.0
    %v1006 = vadd.f32 %v1004, %v1005
    %v1007 = vsel %vm243, %v981, 0.0
    %v1008 = vadd.f32 %v1006, %v1007
    %v1009 = vsel %vm243, %v986, 0.0
    %v1010 = vadd.f32 %v1008, %v1009
    %v1011 = vsel %vm243, %v991, 0.0
    %v1012 = vadd.f32 %v1010, %v1011
    %v1013 = vsel %vm243, %v996, 0.0
    %v1014 = vadd.f32 %v1012, %v1013
    %vm1015 = vcmask 517120
    %v1016 = vsel %vm1015, %v1001, 0.0
    %v1017 = vadd.f32 %v1014, %v1016
    %v1018 = vrot.slane %v1017, 4
    %v1019 = vadd.f32 %v1017, %v1018
    %v1020 = vrot.slane %v1019, 2
    %v1021 = vadd.f32 %v1019, %v1020
    %v1022 = vrot.slane %v1021, 1
    %v1023 = vadd.f32 %v1021, %v1022
    %v1024 = vrcp.pop 50.0
    %v1025 = vmul.f32 %v1023, %v1024
    %v1026 = vsub.f32 %v971, %v1025
    %v1027 = vsub.f32 %v976, %v1025
    %v1028 = vsub.f32 %v981, %v1025
    %v1029 = vsub.f32 %v986, %v1025
    %v1030 = vsub.f32 %v991, %v1025
    %v1031 = vsub.f32 %v996, %v1025
    %v1032 = vsub.f32 %v1001, %v1025
    %v1033 = vmul.f32 %v1026, %v1026
    %v1034 = vmul.f32 %v1027, %v1027
    %v1035 = vmul.f32 %v1028, %v1028
    %v1036 = vmul.f32 %v1029, %v1029
    %v1037 = vmul.f32 %v1030, %v1030
    %v1038 = vmul.f32 %v1031, %v1031
    %v1039 = vmul.f32 %v1032, %v1032
    %v1040 = vsel %vm243, %v1033, 0.0
    %v1041 = vsel %vm243, %v1034, 0.0
    %v1042 = vadd.f32 %v1040, %v1041
    %v1043 = vsel %vm243, %v1035, 0.0
    %v1044 = vadd.f32 %v1042, %v1043
    %v1045 = vsel %vm243, %v1036, 0.0
    %v1046 = vadd.f32 %v1044, %v1045
    %v1047 = vsel %vm243, %v1037, 0.0
    %v1048 = vadd.f32 %v1046, %v1047
    %v1049 = vsel %vm243, %v1038, 0.0
    %v1050 = vadd.f32 %v1048, %v1049
    %v1051 = vsel %vm1015, %v1039, 0.0
    %v1052 = vadd.f32 %v1050, %v1051
    %v1053 = vrot.slane %v1052, 4
    %v1054 = vadd.f32 %v1052, %v1053
    %v1055 = vrot.slane %v1054, 2
    %v1056 = vadd.f32 %v1054, %v1055
    %v1057 = vrot.slane %v1056, 1
    %v1058 = vadd.f32 %v1056, %v1057
    %v1059 = vmul.f32 %v1058, %v1024
    %v1060 = vld [vmem:[%s8] sm:$0x1]
    %v1061 = vadd.f32 %v1059, 1e-05
    %v1062 = vrsqrt.pop %v1061
    %v1063 = vmul.f32 %v1060, %v1062
    %v1064 = vld [vmem:[%s9] sm:$0x1]
    %v1065 = vmul.f32 %v1063, %v1025
    %v1066 = vsub.f32 %v1064, %v1065
    %v1068 = vlaneseq
    %v1069 = vshrl.u32 %v1068, 7
    %v1070 = vsub.s32 0, %v1069
    %v1071 = vrot.slane %v1063, %v1070
    %v1073 = vmul.f32 %v971, %v1071
    %v1074 = vmul.f32 %v976, %v1071
    %v1075 = vmul.f32 %v981, %v1071
    %v1076 = vmul.f32 %v986, %v1071
    %v1077 = vmul.f32 %v991, %v1071
    %v1078 = vmul.f32 %v996, %v1071
    %v1079 = vmul.f32 %v1001, %v1071
    %v1081 = vlaneseq
    %v1082 = vshrl.u32 %v1081, 7
    %v1083 = vsub.s32 0, %v1082
    %v1084 = vrot.slane %v1066, %v1083
    %v1086 = vadd.f32 %v1073, %v1084
    %v1087 = vadd.f32 %v1074, %v1084
    %v1088 = vadd.f32 %v1075, %v1084
    %v1089 = vadd.f32 %v1076, %v1084
    %v1090 = vadd.f32 %v1077, %v1084
    %v1091 = vadd.f32 %v1078, %v1084
    %v1092 = vadd.f32 %v1079, %v1084
    %v1093 = vmul.f32 %v1086, 0.2
    %v1094 = vmul.f32 %v1087, 0.2
    %v1095 = vmul.f32 %v1088, 0.2
    %v1096 = vmul.f32 %v1089, 0.2
    %v1097 = vmul.f32 %v1090, 0.2
    %v1098 = vmul.f32 %v1091, 0.2
    %v1099 = vmul.f32 %v1092, 0.2
    %v1100 = vmax.f32 %v1086, %v1093
    %v1101 = vmax.f32 %v1087, %v1094
    %v1102 = vmax.f32 %v1088, %v1095
    %v1103 = vmax.f32 %v1089, %v1096
    %v1104 = vmax.f32 %v1090, %v1097
    %v1105 = vmax.f32 %v1091, %v1098
    %v1106 = vmax.f32 %v1092, %v1099
    %v1107 = vld [vmem:[%s10] sm:$0xff]
    %v1108 = vld [vmem:[%s10 + $0x8] sm:$0xff]
    %v1109 = vld [vmem:[%s10 + $0x10] sm:$0xff]
    %v1110 = vld [vmem:[%s10 + $0x18] sm:$0xff]
    %v1111 = vld [vmem:[%s10 + $0x20] sm:$0xff]
    %v1112 = vld [vmem:[%s10 + $0x28] sm:$0xff]
    %v1113 = vld [vmem:[%s10 + $0x30] sm:$0x3]
    %v1114 = vmul.f32 %v1100, %v1107
    %v1115 = vmul.f32 %v1101, %v1108
    %v1116 = vmul.f32 %v1102, %v1109
    %v1117 = vmul.f32 %v1103, %v1110
    %v1118 = vmul.f32 %v1104, %v1111
    %v1119 = vmul.f32 %v1105, %v1112
    %v1120 = vmul.f32 %v1106, %v1113
    %v1121 = vsel %vm243, %v1114, 0.0
    %1122 = vadd.xlane.f32.xlu0 %v1121
    %v1123 = vpop.xlane.xlu0 %1122
    %v1124 = vsel %vm243, %v1115, 0.0
    %1125 = vadd.xlane.f32.xlu0 %v1124
    %v1126 = vpop.xlane.xlu0 %1125
    %v1127 = vsel %vm243, %v1116, 0.0
    %1128 = vadd.xlane.f32.xlu0 %v1127
    %v1129 = vpop.xlane.xlu0 %1128
    %v1130 = vsel %vm243, %v1117, 0.0
    %1131 = vadd.xlane.f32.xlu0 %v1130
    %v1132 = vpop.xlane.xlu0 %1131
    %v1133 = vsel %vm243, %v1118, 0.0
    %1134 = vadd.xlane.f32.xlu0 %v1133
    %v1135 = vpop.xlane.xlu0 %1134
    %v1136 = vsel %vm243, %v1119, 0.0
    %1137 = vadd.xlane.f32.xlu0 %v1136
    %v1138 = vpop.xlane.xlu0 %1137
    %v1139 = vsel %vm1015, %v1120, 0.0
    %1140 = vadd.xlane.f32.xlu0 %v1139
    %v1141 = vpop.xlane.xlu0 %1140
    %v1142 = vlaneseq
    %v1143 = vshrl.u32 %v1142, 7
    %v1144 = vadd.s32 %v1143, 8
    %v1145 = vadd.s32 %v1143, 16
    %v1146 = vadd.s32 %v1143, 24
    %v1147 = vadd.s32 %v1143, 32
    %v1148 = vadd.s32 %v1143, 40
    %v1149 = vadd.s32 %v1143, 48
    %v1150 = vlaneseq
    %v1151 = vand.u32 %v1150, 127
    %v1152 = vmul.u32 %v1151, 25
    %vm1153 = vcmp.ge.s32.totalorder %v1143, %v1152
    %vm1154 = vcmp.ge.s32.totalorder %v1144, %v1152
    %vm1155 = vcmp.ge.s32.totalorder %v1145, %v1152
    %vm1156 = vcmp.ge.s32.totalorder %v1146, %v1152
    %vm1157 = vcmp.ge.s32.totalorder %v1147, %v1152
    %vm1158 = vcmp.ge.s32.totalorder %v1148, %v1152
    %vm1159 = vcmp.ge.s32.totalorder %v1149, %v1152
    %v1160 = vadd.s32 %v1151, 1
    %v1161 = vmul.u32 %v1160, 25
    %vm1162 = vcmp.lt.s32.totalorder %v1143, %v1161
    %vm1163 = vcmp.lt.s32.totalorder %v1144, %v1161
    %vm1164 = vcmp.lt.s32.totalorder %v1145, %v1161
    %vm1165 = vcmp.lt.s32.totalorder %v1146, %v1161
    %vm1166 = vcmp.lt.s32.totalorder %v1147, %v1161
    %vm1167 = vcmp.lt.s32.totalorder %v1148, %v1161
    %vm1168 = vcmp.lt.s32.totalorder %v1149, %v1161
    %vm1169 = vmand %vm1153, %vm1162
    %vm1170 = vmand %vm1154, %vm1163
    %vm1171 = vmand %vm1155, %vm1164
    %vm1172 = vmand %vm1156, %vm1165
    %vm1173 = vmand %vm1157, %vm1166
    %vm1174 = vmand %vm1158, %vm1167
    %vm1175 = vmand %vm1159, %vm1168
    %v1176 = vsel %vm1169, %v1123, 0.0
    %v1177 = vsel %vm1170, %v1126, 0.0
    %v1178 = vsel %vm1171, %v1129, 0.0
    %v1179 = vsel %vm1172, %v1132, 0.0
    %v1180 = vsel %vm1173, %v1135, 0.0
    %v1181 = vsel %vm1174, %v1138, 0.0
    %v1182 = vsel %vm1175, %v1141, 0.0
    %vm1183 = vcmask 15360
    %v1184 = vsel %vm1183, %v1176, 0.0
    %v1185 = vsel %vm1183, %v1177, 0.0
    %v1186 = vadd.f32 %v1184, %v1185
    %v1187 = vsel %vm1183, %v1178, 0.0
    %v1188 = vadd.f32 %v1186, %v1187
    %v1189 = vsel %vm1183, %v1179, 0.0
    %v1190 = vadd.f32 %v1188, %v1189
    %v1191 = vsel %vm1183, %v1180, 0.0
    %v1192 = vadd.f32 %v1190, %v1191
    %v1193 = vsel %vm1183, %v1181, 0.0
    %v1194 = vadd.f32 %v1192, %v1193
    %vm1195 = vcmask 9216
    %v1196 = vsel %vm1195, %v1182, 0.0
    %v1197 = vadd.f32 %v1194, %v1196
    %v1198 = vrot.slane %v1197, 4
    %v1199 = vadd.f32 %v1197, %v1198
    %v1200 = vrot.slane %v1199, 2
    %v1201 = vadd.f32 %v1199, %v1200
    %v1202 = vrot.slane %v1201, 1
    %v1203 = vadd.f32 %v1201, %v1202
    %v1204 = vld [vmem:[#allocation2] sm:$0x1]
    %1206 = vset.pattern.permute.xlu0 0
    %1207 = vperm.xlu0 %1206, %v1204
    %v1208 = vpop.permute.xlu0 %1207
    %v1210 = vlaneseq
    %v1211 = vshrl.u32 %v1210, 7
    %v1212 = vsub.s32 0, %v1211
    %v1213 = vrot.slane %v1208, %v1212
    %v1214 = vadd.f32 %v1203, %v1213
    %vm1215 = vcmask 8192
    %1216 = vst.msk [vmem:[#allocation3] sm:$0x1] %vm1215, %v1214
    // Predicated region
    $region50: #{discriminator_forward.1} parent=1 // pred_check
      _
    $region51: #{discriminator_forward.1} parent=1 // pred_check_branch
      %1218 = sbr.rel (0) target = $region53
    $region52: #{discriminator_forward.1} parent=1 // pred_region
      %s1220 = ssub.s32 16, 16
      %1221 = vsyncadd [#allocation4], %s1220
      %s1223 = sshll.u32 [#allocation3], 4
      %s1224 = int_to_ptr.vmem [resolvable:$true] %s1223
      %1226 = dma.vmem_to_hbm [thread:$0]  %s1224, 16, %s12, [#allocation4]
    $region53: #{discriminator_forward.1} parent=1 // pred_fallthru
      _
    // Predicated region
    $region54: #{discriminator_forward.1} parent=1 // pred_check
      _
    $region55: #{discriminator_forward.1} parent=1 // pred_check_branch
      %1228 = sbr.rel (0) target = $region57
    $region56: #{discriminator_forward.1} parent=1 // pred_region
      %1229 = dma.done [#allocation4], 16
    $region57: #{discriminator_forward.1} parent=1 // pred_fallthru
      _
    %1230 = vsyncpa [#allocation4], 1

</llo_original>
